<compile_context>
chip_gen: v6e
topology: v6e:2x2x1
jax: 0.10.0
libtpu: 0.0.40
codegen_flags: <defaults>
</compile_context>

<pallas_src>
import functools

import jax
import jax.numpy as jnp
import numpy as np
from jax.experimental import pallas as pl
from jax.experimental.pallas import tpu as pltpu


_LANE = 128
_SUBLANE_BF16 = 16            # bf16 packs 2 rows per sublane
_K_SINGLE_STEP_MAX = 2048     # contraction dims up to this run as one K step
_VMEM_LIMIT = 32 * 1024 * 1024


def _round_up(x, m):
    return ((x + m - 1) // m) * m


def _pick_tile(padded, max_tile, base):
    """Largest multiple of `base` <= max_tile that divides `padded`."""
    t = min(padded, max_tile)
    t = max((t // base) * base, base)
    while padded % t != 0:
        t -= base
    return t


# ------------------------------------------------------------------
# Pallas kernels: tiled matmul with fused shift (+residual, +ReLU) epilogue
# (the BN scale is already folded into the weight matrix).
# ------------------------------------------------------------------
def _epilogue(acc_f32, shift, res_ref, relu, out_dtype):
    r = acc_f32 + shift
    if res_ref is not None:
        r = r + res_ref[...].astype(jnp.float32)
    if relu:
        r = jnp.maximum(r, 0.0)
    return r.astype(out_dtype)


def _matmul_kernel_single_k(a_ref, b_ref, shift_ref, *rest, relu, has_res):
    # Whole contraction in one step: no accumulator scratch needed.
    if has_res:
        res_ref, o_ref = rest
    else:
        res_ref, (o_ref,) = None, rest
    acc = jnp.dot(a_ref[...], b_ref[...], preferred_element_type=jnp.float32)
    o_ref[...] = _epilogue(acc, shift_ref[...], res_ref, relu, o_ref.dtype)


def _matmul_kernel_multi_k(a_ref, b_ref, shift_ref, *rest, relu, has_res):
    if has_res:
        res_ref, o_ref, acc_ref = rest
    else:
        res_ref, (o_ref, acc_ref) = None, rest

    @pl.when(pl.program_id(2) == 0)
    def _():
        acc_ref[...] = jnp.zeros_like(acc_ref)

    acc_ref[...] += jnp.dot(a_ref[...], b_ref[...],
                            preferred_element_type=jnp.float32)

    @pl.when(pl.program_id(2) == pl.num_programs(2) - 1)
    def _():
        o_ref[...] = _epilogue(acc_ref[...], shift_ref[...], res_ref, relu,
                               o_ref.dtype)


def matmul_bn_act(a, b, shift, residual=None, relu=False,
                  out_dtype=jnp.bfloat16):
    """y = act((a @ b) + shift [+ residual]).

    a: (M,K), b: (K,N) with the BN scale pre-folded, shift: (N,) f32,
    residual: (M,N) or None.  Streams (a, b, residual, out) are bf16 unless
    out_dtype overrides the output; accumulation and shift stay f32.
    """
    M, K = a.shape
    _, N = b.shape

    Mp = _round_up(M, _SUBLANE_BF16)
    Np = _round_up(N, _LANE)

    # Contraction dim: avoid padding K all the way to 128-multiples when the
    # whole K fits a single step (block dim == full array dim is legal).
    Kp16 = max(_round_up(K, _SUBLANE_BF16), _LANE)
    single_k = Kp16 <= _K_SINGLE_STEP_MAX
    Kp = Kp16 if single_k else _round_up(K, _LANE)

    tm = _pick_tile(Mp, 512, _SUBLANE_BF16)
    tn = _pick_tile(Np, 256, _LANE)
    tk = Kp if single_k else _pick_tile(Kp, 1024, _LANE)

    # v7x megacore: guarantee >=2 steps on a parallel grid axis when possible.
    if (Mp // tm) * (Np // tn) < 2 and Mp >= 2 * _SUBLANE_BF16:
        tm = _pick_tile(Mp, Mp // 2, _SUBLANE_BF16)

    a_p = jnp.pad(a.astype(jnp.bfloat16), ((0, Mp - M), (0, Kp - K)))
    b_p = jnp.pad(b.astype(jnp.bfloat16), ((0, Kp - K), (0, Np - N)))
    shift_p = jnp.pad(shift, (0, Np - N)).reshape(1, Np).astype(jnp.float32)

    has_res = residual is not None
    args = [a_p, b_p, shift_p]
    if has_res:
        args.append(jnp.pad(residual.astype(jnp.bfloat16),
                            ((0, Mp - M), (0, Np - N))))

    if single_k:
        grid = (Mp // tm, Np // tn)
        in_specs = [
            pl.BlockSpec((tm, tk), lambda i, j: (i, 0)),
            pl.BlockSpec((tk, tn), lambda i, j: (0, j)),
            pl.BlockSpec((1, tn), lambda i, j: (0, j)),
        ]
        if has_res:
            in_specs.append(pl.BlockSpec((tm, tn), lambda i, j: (i, j)))
        out_spec = pl.BlockSpec((tm, tn), lambda i, j: (i, j))
        kernel = functools.partial(_matmul_kernel_single_k,
                                   relu=relu, has_res=has_res)
        scratch = []
        dims = ("parallel", "parallel")
    else:
        grid = (Mp // tm, Np // tn, Kp // tk)
        in_specs = [
            pl.BlockSpec((tm, tk), lambda i, j, k: (i, k)),
            pl.BlockSpec((tk, tn), lambda i, j, k: (k, j)),
            pl.BlockSpec((1, tn), lambda i, j, k: (0, j)),
        ]
        if has_res:
            in_specs.append(pl.BlockSpec((tm, tn), lambda i, j, k: (i, j)))
        out_spec = pl.BlockSpec((tm, tn), lambda i, j, k: (i, j))
        kernel = functools.partial(_matmul_kernel_multi_k,
                                   relu=relu, has_res=has_res)
        scratch = [pltpu.VMEM((tm, tn), jnp.float32)]
        dims = ("parallel", "parallel", "arbitrary")

    out = pl.pallas_call(
        kernel,
        out_shape=jax.ShapeDtypeStruct((Mp, Np), out_dtype),
        grid_spec=pltpu.PrefetchScalarGridSpec(
            num_scalar_prefetch=0,
            grid=grid,
            in_specs=in_specs,
            out_specs=out_spec,
            scratch_shapes=scratch,
        ),
        compiler_params=pltpu.CompilerParams(
            dimension_semantics=dims,
            vmem_limit_bytes=_VMEM_LIMIT),
    )(*args)
    return out[:M, :N]


# ------------------------------------------------------------------
# Conv2d (bias=False) + folded BatchNorm (+ optional residual, ReLU)
# ------------------------------------------------------------------
def conv_bn(x, w, bn, stride=1, pad=0, relu=False, residual=None,
            eps=1e-5, out_dtype=jnp.bfloat16):
    """x: (N,H,W,C) NHWC; w: (O,C,kh,kw) PyTorch layout; bn: dict of (O,)
    gamma/beta/mean/var.  BN scale folded into weights, shift in epilogue."""
    O, C, kh, kw = w.shape
    N, H, W, _ = x.shape

    # Cast activations to bf16 BEFORE padding / patch extraction so the
    # im2col copy and all glue ops move half the bytes.
    xb = x.astype(jnp.bfloat16)
    xp = jnp.pad(xb, ((0, 0), (pad, pad), (pad, pad), (0, 0)))
    Hp, Wp = H + 2 * pad, W + 2 * pad
    oh = (Hp - kh) // stride + 1
    ow = (Wp - kw) // stride + 1

    cols = []
    for i in range(kh):
        for j in range(kw):
            cols.append(xp[:, i:i + stride * oh:stride,
                           j:j + stride * ow:stride, :])
    patches = jnp.concatenate(cols, axis=-1)          # (N,oh,ow,kh*kw*C) bf16
    a = patches.reshape(N * oh * ow, kh * kw * C)

    inv_std = 1.0 / jnp.sqrt(bn["var"] + eps)
    scale = bn["gamma"] * inv_std
    shift = bn["beta"] - bn["mean"] * scale
    wm = jnp.transpose(w, (2, 3, 1, 0)).reshape(kh * kw * C, O)
    wm = wm * scale[None, :]                          # fold BN scale (f32)

    res2d = None
    if residual is not None:
        assert residual.shape == (N, oh, ow, O), (
            "residual must match conv output; identity shortcut requires "
            "stride=1 and in_c==out_c, otherwise use a downsample path")
        res2d = residual.reshape(N * oh * ow, O)

    y = matmul_bn_act(a, wm, shift, residual=res2d, relu=relu,
                      out_dtype=out_dtype)
    return y.reshape(N, oh, ow, O)


# ------------------------------------------------------------------
# basic_block forward (NCHW in / NCHW out, PyTorch convention)
# ------------------------------------------------------------------
def basic_block_forward(params, x_nchw, stride):
    x = jnp.transpose(x_nchw, (0, 2, 3, 1))               # NCHW -> NHWC

    if params.get("downsample") is not None:
        ds = params["downsample"]
        residual = conv_bn(x, ds["conv_w"], ds["bn"], stride=stride, pad=0,
                           relu=False, out_dtype=jnp.bfloat16)
    else:
        residual = x.astype(jnp.bfloat16)

    out = conv_bn(x, params["conv1_w"], params["bn1"], stride=stride, pad=1,
                  relu=True, out_dtype=jnp.bfloat16)
    # conv2 + bn2 + residual add + final ReLU fused into one matmul epilogue;
    # the block's external output stays f32 like the PyTorch reference.
    out = conv_bn(out, params["conv2_w"], params["bn2"], stride=1, pad=1,
                  relu=True, residual=residual, out_dtype=jnp.float32)
    return jnp.transpose(out, (0, 3, 1, 2))               # NHWC -> NCHW


# ------------------------------------------------------------------
# Deterministic parameter initialization
# ------------------------------------------------------------------
def conv_weight(key, out_c, in_c, kh, kw):
    s = 1.0 / np.sqrt(in_c * kh * kw)
    return jax.random.uniform(key, (out_c, in_c, kh, kw), jnp.float32, -s, s)


def bn_params(key, c):
    k1, k2, k3, k4 = jax.random.split(key, 4)
    return {
        "gamma": jax.random.uniform(k1, (c,), jnp.float32, 0.5, 1.5),
        "beta":  jax.random.uniform(k2, (c,), jnp.float32, -0.2, 0.2),
        "mean":  jax.random.uniform(k3, (c,), jnp.float32, -0.2, 0.2),
        "var":   jax.random.uniform(k4, (c,), jnp.float32, 0.5, 1.5),
    }


def init_basic_block(key, in_c, out_c, stride):
    ks = jax.random.split(key, 6)
    p = {
        "conv1_w": conv_weight(ks[0], out_c, in_c, 3, 3),
        "bn1": bn_params(ks[1], out_c),
        "conv2_w": conv_weight(ks[2], out_c, out_c, 3, 3),
        "bn2": bn_params(ks[3], out_c),
        "downsample": None,
    }
    if stride != 1 or in_c != out_c:
        p["downsample"] = {
            "conv_w": conv_weight(ks[4], out_c, in_c, 1, 1),
            "bn": bn_params(ks[5], out_c),
        }
    return p


# ------------------------------------------------------------------
if __name__ == "__main__":
    batch, in_c, out_c, hw = 2, 16, 32, 16
    key = jax.random.PRNGKey(0)
    kp1, kp2, kx = jax.random.split(key, 3)

    # Block A: stride-2 with 1x1 projection (downsample) shortcut.
    params_ds = init_basic_block(kp1, in_c, out_c, stride=2)
    # Block B: stride-1 identity shortcut (in_c == out_c).
    params_id = init_basic_block(kp2, out_c, out_c, stride=1)

    x = jax.random.normal(kx, (batch, in_c, hw, hw), jnp.float32)

    fwd = jax.jit(basic_block_forward, static_argnames=("stride",))
    y1 = fwd(params_ds, x, stride=2)           # (2, 32, 8, 8)
    y2 = fwd(params_id, y1, stride=1)          # (2, 32, 8, 8)
    jax.block_until_ready((y1, y2))

    assert y1.shape == (batch, out_c, hw // 2, hw // 2)
    assert y2.shape == (batch, out_c, hw // 2, hw // 2)
    assert bool(jnp.all(jnp.isfinite(y1))) and bool(jnp.all(jnp.isfinite(y2)))
    assert bool(jnp.all(y1 >= 0.0)) and bool(jnp.all(y2 >= 0.0))  # final ReLU
    print("KERNEL_OK")
</pallas_src>

<mosaic_0001>
module attributes {stable_mosaic.version = 11 : i64} {
  func.func @_matmul_kernel_single_k(%arg0: i32, %arg1: i32, %arg2: memref<64x128xbf16, #tpu.memory_space<vmem>>, %arg3: memref<128x128xbf16, #tpu.memory_space<vmem>>, %arg4: memref<1x128xf32, #tpu.memory_space<vmem>>, %arg5: memref<64x128xbf16, #tpu.memory_space<vmem>>) attributes {dimension_semantics = [#tpu.dimension_semantics<parallel>, #tpu.dimension_semantics<parallel>], iteration_bounds = array<i64: 2, 1>, scalar_prefetch = 0 : i64, scratch_operands = 0 : i64, tpu.core_type = #tpu.core_type<tc>, window_params = [{transform_indices = @transform_0, window_bounds = array<i64: 64, 128>}, {transform_indices = @transform_1, window_bounds = array<i64: 128, 128>}, {transform_indices = @transform_2, window_bounds = array<i64: 1, 128>}, {transform_indices = @transform_3, window_bounds = array<i64: 64, 128>}]} {
    %c0 = arith.constant 0 : index
    %c0_0 = arith.constant 0 : index
    %0 = vector.load %arg2[%c0, %c0_0] : memref<64x128xbf16, #tpu.memory_space<vmem>>, vector<64x128xbf16>
    %c0_1 = arith.constant 0 : index
    %c0_2 = arith.constant 0 : index
    %1 = vector.load %arg3[%c0_1, %c0_2] : memref<128x128xbf16, #tpu.memory_space<vmem>>, vector<128x128xbf16>
    %cst = arith.constant dense<0.000000e+00> : vector<64x128xf32>
    %2 = tpu.matmul %0, %1, %cst {dimension_numbers = #tpu.dot_dimension_numbers<[1], [0], [0], [1], [0, 0, 1, 1], [], []>} : vector<64x128xbf16>, vector<128x128xbf16>, vector<64x128xf32> -> vector<64x128xf32>
    %c0_3 = arith.constant 0 : index
    %c0_4 = arith.constant 0 : index
    %3 = vector.load %arg4[%c0_3, %c0_4] : memref<1x128xf32, #tpu.memory_space<vmem>>, vector<1x128xf32>
    %4 = vector.broadcast %3 : vector<1x128xf32> to vector<64x128xf32>
    %5 = arith.addf %2, %4 : vector<64x128xf32>
    %6 = arith.truncf %5 : vector<64x128xf32> to vector<64x128xbf16>
    %c0_5 = arith.constant 0 : index
    %c0_6 = arith.constant 0 : index
    %7 = vector.load %arg5[%c0_5, %c0_6] : memref<64x128xbf16, #tpu.memory_space<vmem>>, vector<64x128xbf16>
    tpu.vector_store %arg5[%c0_5, %c0_6], %6 {strides = array<i32>} : memref<64x128xbf16, #tpu.memory_space<vmem>>, vector<64x128xbf16>,
    return
  }
  func.func @transform_0(%arg0: i32, %arg1: i32) -> (i32, i32) {
    %c0_i32 = arith.constant 0 : i32
    %c0_i32_0 = arith.constant 0 : i32
    return %arg0, %c0_i32 : i32, i32
  }
  func.func @transform_1(%arg0: i32, %arg1: i32) -> (i32, i32) {
    %c0_i32 = arith.constant 0 : i32
    %c0_i32_0 = arith.constant 0 : i32
    return %c0_i32, %arg1 : i32, i32
  }
  func.func @transform_2(%arg0: i32, %arg1: i32) -> (i32, i32) {
    %c0_i32 = arith.constant 0 : i32
    %c0_i32_0 = arith.constant 0 : i32
    return %c0_i32, %arg1 : i32, i32
  }
  func.func @transform_3(%arg0: i32, %arg1: i32) -> (i32, i32) {
    %c0_i32 = arith.constant 0 : i32
    return %arg0, %arg1 : i32, i32
  }
}

module attributes {stable_mosaic.version = 11 : i64} {
  func.func @_matmul_kernel_single_k(%arg0: i32, %arg1: i32, %arg2: memref<64x144xbf16, #tpu.memory_space<vmem>>, %arg3: memref<144x128xbf16, #tpu.memory_space<vmem>>, %arg4: memref<1x128xf32, #tpu.memory_space<vmem>>, %arg5: memref<64x128xbf16, #tpu.memory_space<vmem>>) attributes {dimension_semantics = [#tpu.dimension_semantics<parallel>, #tpu.dimension_semantics<parallel>], iteration_bounds = array<i64: 2, 1>, scalar_prefetch = 0 : i64, scratch_operands = 0 : i64, tpu.core_type = #tpu.core_type<tc>, window_params = [{transform_indices = @transform_0, window_bounds = array<i64: 64, 144>}, {transform_indices = @transform_1, window_bounds = array<i64: 144, 128>}, {transform_indices = @transform_2, window_bounds = array<i64: 1, 128>}, {transform_indices = @transform_3, window_bounds = array<i64: 64, 128>}]} {
    %c0 = arith.constant 0 : index
    %c0_0 = arith.constant 0 : index
    %0 = vector.load %arg2[%c0, %c0_0] : memref<64x144xbf16, #tpu.memory_space<vmem>>, vector<64x144xbf16>
    %c0_1 = arith.constant 0 : index
    %c0_2 = arith.constant 0 : index
    %1 = vector.load %arg3[%c0_1, %c0_2] : memref<144x128xbf16, #tpu.memory_space<vmem>>, vector<144x128xbf16>
    %cst = arith.constant dense<0.000000e+00> : vector<64x128xf32>
    %2 = tpu.matmul %0, %1, %cst {dimension_numbers = #tpu.dot_dimension_numbers<[1], [0], [0], [1], [0, 0, 1, 1], [], []>} : vector<64x144xbf16>, vector<144x128xbf16>, vector<64x128xf32> -> vector<64x128xf32>
    %c0_3 = arith.constant 0 : index
    %c0_4 = arith.constant 0 : index
    %3 = vector.load %arg4[%c0_3, %c0_4] : memref<1x128xf32, #tpu.memory_space<vmem>>, vector<1x128xf32>
    %4 = vector.broadcast %3 : vector<1x128xf32> to vector<64x128xf32>
    %5 = arith.addf %2, %4 : vector<64x128xf32>
    %cst_5 = arith.constant 0.000000e+00 : f32
    %6 = vector.broadcast %cst_5 : f32 to vector<64x128xf32>
    %7 = arith.maximumf %5, %6 : vector<64x128xf32>
    %8 = arith.truncf %7 : vector<64x128xf32> to vector<64x128xbf16>
    %c0_6 = arith.constant 0 : index
    %c0_7 = arith.constant 0 : index
    %9 = vector.load %arg5[%c0_6, %c0_7] : memref<64x128xbf16, #tpu.memory_space<vmem>>, vector<64x128xbf16>
    tpu.vector_store %arg5[%c0_6, %c0_7], %8 {strides = array<i32>} : memref<64x128xbf16, #tpu.memory_space<vmem>>, vector<64x128xbf16>,
    return
  }
  func.func @transform_0(%arg0: i32, %arg1: i32) -> (i32, i32) {
    %c0_i32 = arith.constant 0 : i32
    %c0_i32_0 = arith.constant 0 : i32
    return %arg0, %c0_i32 : i32, i32
  }
  func.func @transform_1(%arg0: i32, %arg1: i32) -> (i32, i32) {
    %c0_i32 = arith.constant 0 : i32
    %c0_i32_0 = arith.constant 0 : i32
    return %c0_i32, %arg1 : i32, i32
  }
  func.func @transform_2(%arg0: i32, %arg1: i32) -> (i32, i32) {
    %c0_i32 = arith.constant 0 : i32
    %c0_i32_0 = arith.constant 0 : i32
    return %c0_i32, %arg1 : i32, i32
  }
  func.func @transform_3(%arg0: i32, %arg1: i32) -> (i32, i32) {
    %c0_i32 = arith.constant 0 : i32
    return %arg0, %arg1 : i32, i32
  }
}

module attributes {stable_mosaic.version = 11 : i64} {
  func.func @_matmul_kernel_single_k(%arg0: i32, %arg1: i32, %arg2: memref<64x288xbf16, #tpu.memory_space<vmem>>, %arg3: memref<288x128xbf16, #tpu.memory_space<vmem>>, %arg4: memref<1x128xf32, #tpu.memory_space<vmem>>, %arg5: memref<64x128xbf16, #tpu.memory_space<vmem>>, %arg6: memref<64x128xf32, #tpu.memory_space<vmem>>) attributes {dimension_semantics = [#tpu.dimension_semantics<parallel>, #tpu.dimension_semantics<parallel>], iteration_bounds = array<i64: 2, 1>, scalar_prefetch = 0 : i64, scratch_operands = 0 : i64, tpu.core_type = #tpu.core_type<tc>, window_params = [{transform_indices = @transform_0, window_bounds = array<i64: 64, 288>}, {transform_indices = @transform_1, window_bounds = array<i64: 288, 128>}, {transform_indices = @transform_2, window_bounds = array<i64: 1, 128>}, {transform_indices = @transform_3, window_bounds = array<i64: 64, 128>}, {transform_indices = @transform_4, window_bounds = array<i64: 64, 128>}]} {
    %c0 = arith.constant 0 : index
    %c0_0 = arith.constant 0 : index
    %0 = vector.load %arg2[%c0, %c0_0] : memref<64x288xbf16, #tpu.memory_space<vmem>>, vector<64x288xbf16>
    %c0_1 = arith.constant 0 : index
    %c0_2 = arith.constant 0 : index
    %1 = vector.load %arg3[%c0_1, %c0_2] : memref<288x128xbf16, #tpu.memory_space<vmem>>, vector<288x128xbf16>
    %cst = arith.constant dense<0.000000e+00> : vector<64x128xf32>
    %2 = tpu.matmul %0, %1, %cst {dimension_numbers = #tpu.dot_dimension_numbers<[1], [0], [0], [1], [0, 0, 1, 1], [], []>} : vector<64x288xbf16>, vector<288x128xbf16>, vector<64x128xf32> -> vector<64x128xf32>
    %c0_3 = arith.constant 0 : index
    %c0_4 = arith.constant 0 : index
    %3 = vector.load %arg4[%c0_3, %c0_4] : memref<1x128xf32, #tpu.memory_space<vmem>>, vector<1x128xf32>
    %4 = vector.broadcast %3 : vector<1x128xf32> to vector<64x128xf32>
    %5 = arith.addf %2, %4 : vector<64x128xf32>
    %c0_5 = arith.constant 0 : index
    %c0_6 = arith.constant 0 : index
    %6 = vector.load %arg5[%c0_5, %c0_6] : memref<64x128xbf16, #tpu.memory_space<vmem>>, vector<64x128xbf16>
    %7 = arith.extf %6 : vector<64x128xbf16> to vector<64x128xf32>
    %8 = arith.addf %5, %7 : vector<64x128xf32>
    %cst_7 = arith.constant 0.000000e+00 : f32
    %9 = vector.broadcast %cst_7 : f32 to vector<64x128xf32>
    %10 = arith.maximumf %8, %9 : vector<64x128xf32>
    %c0_8 = arith.constant 0 : index
    %c0_9 = arith.constant 0 : index
    %11 = vector.load %arg6[%c0_8, %c0_9] : memref<64x128xf32, #tpu.memory_space<vmem>>, vector<64x128xf32>
    tpu.vector_store %arg6[%c0_8, %c0_9], %10 {strides = array<i32>} : memref<64x128xf32, #tpu.memory_space<vmem>>, vector<64x128xf32>,
    return
  }
  func.func @transform_0(%arg0: i32, %arg1: i32) -> (i32, i32) {
    %c0_i32 = arith.constant 0 : i32
    %c0_i32_0 = arith.constant 0 : i32
    return %arg0, %c0_i32 : i32, i32
  }
  func.func @transform_1(%arg0: i32, %arg1: i32) -> (i32, i32) {
    %c0_i32 = arith.constant 0 : i32
    %c0_i32_0 = arith.constant 0 : i32
    return %c0_i32, %arg1 : i32, i32
  }
  func.func @transform_2(%arg0: i32, %arg1: i32) -> (i32, i32) {
    %c0_i32 = arith.constant 0 : i32
    %c0_i32_0 = arith.constant 0 : i32
    return %c0_i32, %arg1 : i32, i32
  }
  func.func @transform_3(%arg0: i32, %arg1: i32) -> (i32, i32) {
    %c0_i32 = arith.constant 0 : i32
    return %arg0, %arg1 : i32, i32
  }
  func.func @transform_4(%arg0: i32, %arg1: i32) -> (i32, i32) {
    %c0_i32 = arith.constant 0 : i32
    return %arg0, %arg1 : i32, i32
  }
}

</mosaic_0001>

<llo_original>
// kernel: basic_block_forward.3
$region0: #{basic_block_forward.3}
  #allocation0 [shape = 'u32[]', space=smem, size = 0x4, offset = 0x4, fixed_abs, tag = 'smem constant byte address 0x4 - core index']
  #allocation1 [shape = 'u32[144,128]{1,0:T(1,128)}', space=vmem, size = 0x12000, scoped, tag = 'internal scratch']
  %s0 = inlined_call_operand.vmem [shape: bf16[128,128], index: 0, kind: input, shape index: {}]
  %s1 = inlined_call_operand.vmem [shape: bf16[128,128], index: 1, kind: input, shape index: {}]
  %s2 = inlined_call_operand.vmem [shape: f32[1,128], index: 2, kind: input, shape index: {}]
  %s3 = inlined_call_operand.vmem [shape: bf16[128,128], index: 3, kind: output, shape index: {}]
  %s4 = sld [smem:[#allocation0]]
  $region45: #{basic_block_forward.3} parent=0
    _
  %s6 = ssub.s32 1, %s4
  %s7 = scalar_select 0, %s6, %s4
  loop: start=0, step=1, limit=4
  $region2: #{basic_block_forward.3} parent=0 // loop_pre_header
    _
  $region3: #{basic_block_forward.3} parent=0 // loop_header
    %s9 = sphi 0, %s13
    %p10 = scmp.ge.s32.totalorder %s9, 4
    %s16 = sphi 0, %s28
    %s17 = sphi 0, %s24
    %s18 = sphi 0, %s16
    %s19 = sphi 0, %s17
    %s20 = sphi 0, %s18
    %s21 = sphi 0, %s19
    %s31 = sphi 0, %s33
    %s34 = sphi 0, %s31
    %s35 = sphi 0, %s34
    %s51 = sphi 0, %s35
    %s57 = sphi 0, %s59
    %s60 = sphi 0, %s57
    %s61 = sphi 0, %s60
    %s77 = sphi 0, %s61
    %s83 = sphi 0, %s85
    %s86 = sphi 0, %s83
    %s87 = sphi 0, %s86
    %s103 = sphi 0, %s87
    %s111 = sphi 0, %s113
    %s114 = sphi 0, %s111
    %s115 = sphi 0, %s114
    %s131 = sphi 0, %s115
  $region4: #{basic_block_forward.3} parent=0 // loop_header_branch
    %12 = sbr.rel (%p10) target = $region8
  $region5: #{basic_block_forward.3} parent=0 // loop_body
    %s14 = ssub.s32 %s9, 1
    %s15 = ssub.s32 %s9, 2
    %s22 = sadd.s32 1, %s17
    %p23 = scmp.ge.s32.totalorder %s22, 1
    %s24 = scalar_select %p23, 0, %s22
    %s25 = sadd.s32 1, %s16
    %s26 = scalar_select %p23, %s25, %s16
    %p27 = scmp.ge.s32.totalorder %s26, 2
    %s28 = scalar_select %p27, 0, %s26
    %s29 = ssub.s32 %s16, %s28
    %p30 = scmp.eq.s32.totalorder %s29, 0
    %s32 = sadd.s32 %s31, 1
    %s33 = scalar_select %p30, %s31, %s32
    %p36 = pneg %p30
    %p37 = scmp.eq.s32.totalorder %s9, 1
    %p38 = por %p36, %p37
    %p39 = scmp.ne.s32.totalorder %s31, %s34
    %p40 = scmp.eq.s32.totalorder %s9, 0
    %p41 = por %p39, %p40
    %p42 = scmp.ne.s32.totalorder %s31, %s34
    %p43 = scmp.eq.s32.totalorder %s14, 1
    %p44 = por %p42, %p43
    %p45 = scmp.ne.s32.totalorder %s34, %s35
    %p46 = scmp.eq.s32.totalorder %s14, 0
    %p47 = por %p45, %p46
    %p48 = scmp.ne.s32.totalorder %s34, %s35
    %p49 = scmp.eq.s32.totalorder %s15, 1
    %p50 = por %p48, %p49
    %p52 = scmp.ne.s32.totalorder %s35, %s51
    %p53 = scmp.eq.s32.totalorder %s15, 0
    %p54 = por %p52, %p53
    %s55 = ssub.s32 %s17, %s24
    %p56 = scmp.eq.s32.totalorder %s55, 0
    %s58 = sadd.s32 %s57, 1
    %s59 = scalar_select %p56, %s57, %s58
    %p62 = pneg %p56
    %p63 = scmp.eq.s32.totalorder %s9, 1
    %p64 = por %p62, %p63
    %p65 = scmp.ne.s32.totalorder %s57, %s60
    %p66 = scmp.eq.s32.totalorder %s9, 0
    %p67 = por %p65, %p66
    %p68 = scmp.ne.s32.totalorder %s57, %s60
    %p69 = scmp.eq.s32.totalorder %s14, 1
    %p70 = por %p68, %p69
    %p71 = scmp.ne.s32.totalorder %s60, %s61
    %p72 = scmp.eq.s32.totalorder %s14, 0
    %p73 = por %p71, %p72
    %p74 = scmp.ne.s32.totalorder %s60, %s61
    %p75 = scmp.eq.s32.totalorder %s15, 1
    %p76 = por %p74, %p75
    %p78 = scmp.ne.s32.totalorder %s61, %s77
    %p79 = scmp.eq.s32.totalorder %s15, 0
    %p80 = por %p78, %p79
    %s81 = ssub.s32 %s17, %s24
    %p82 = scmp.eq.s32.totalorder %s81, 0
    %s84 = sadd.s32 %s83, 1
    %s85 = scalar_select %p82, %s83, %s84
    %p88 = pneg %p82
    %p89 = scmp.eq.s32.totalorder %s9, 1
    %p90 = por %p88, %p89
    %p91 = scmp.ne.s32.totalorder %s83, %s86
    %p92 = scmp.eq.s32.totalorder %s9, 0
    %p93 = por %p91, %p92
    %p94 = scmp.ne.s32.totalorder %s83, %s86
    %p95 = scmp.eq.s32.totalorder %s14, 1
    %p96 = por %p94, %p95
    %p97 = scmp.ne.s32.totalorder %s86, %s87
    %p98 = scmp.eq.s32.totalorder %s14, 0
    %p99 = por %p97, %p98
    %p100 = scmp.ne.s32.totalorder %s86, %s87
    %p101 = scmp.eq.s32.totalorder %s15, 1
    %p102 = por %p100, %p101
    %p104 = scmp.ne.s32.totalorder %s87, %s103
    %p105 = scmp.eq.s32.totalorder %s15, 0
    %p106 = por %p104, %p105
    %s107 = ssub.s32 %s16, %s28
    %s108 = ssub.s32 %s17, %s24
    %s109 = sor.u32 %s107, %s108
    %p110 = scmp.eq.s32.totalorder %s109, 0
    %s112 = sadd.s32 %s111, 1
    %s113 = scalar_select %p110, %s111, %s112
    %p116 = pneg %p110
    %p117 = scmp.eq.s32.totalorder %s9, 1
    %p118 = por %p116, %p117
    %p119 = scmp.ne.s32.totalorder %s111, %s114
    %p120 = scmp.eq.s32.totalorder %s9, 0
    %p121 = por %p119, %p120
    %p122 = scmp.ne.s32.totalorder %s111, %s114
    %p123 = scmp.eq.s32.totalorder %s14, 1
    %p124 = por %p122, %p123
    %p125 = scmp.ne.s32.totalorder %s114, %s115
    %p126 = scmp.eq.s32.totalorder %s14, 0
    %p127 = por %p125, %p126
    %p128 = scmp.ne.s32.totalorder %s114, %s115
    %p129 = scmp.eq.s32.totalorder %s15, 1
    %p130 = por %p128, %p129
    %p132 = scmp.ne.s32.totalorder %s115, %s131
    %p133 = scmp.eq.s32.totalorder %s15, 0
    %p134 = por %p132, %p133
    %p135 = scmp.le.s32.totalorder 1, %s9
    %p136 = scmp.lt.s32.totalorder %s9, 3
    %p137 = pnand %p135, %p136
    %p138 = pneg %p137
    // Predicated region
    $region9: #{basic_block_forward.3} parent=5 // pred_check
      _
    $region10: #{basic_block_forward.3} parent=5 // pred_check_branch
      %140 = sbr.rel (%p137) target = $region12
    $region11: #{basic_block_forward.3} parent=5 // pred_region
      %s141 = ssub.s32 %s9, 1
      // Predicated region
      $region13: #{basic_block_forward.3} parent=11 // pred_check
        %p142 = pneg %p73
      $region14: #{basic_block_forward.3} parent=11 // pred_check_branch
        %144 = sbr.rel (%p142) target = $region16
      $region15: #{basic_block_forward.3} parent=11 // pred_region
        %p145 = scmp.lt.s32.totalorder %s19, 0
        %s146 = scalar_select %p145, %s19, 0
        %s147 = smul.addr %s146, 4
        %s148 = scalar_lea.vmem %s1, %s147
      $region16: #{basic_block_forward.3} parent=11 // pred_fallthru
        _
      // Predicated region
      $region17: #{basic_block_forward.3} parent=11 // pred_check
        %p149 = pneg %p99
      $region18: #{basic_block_forward.3} parent=11 // pred_check_branch
        %151 = sbr.rel (%p149) target = $region20
      $region19: #{basic_block_forward.3} parent=11 // pred_region
        %p152 = scmp.lt.s32.totalorder %s19, 0
        %s153 = scalar_select %p152, %s19, 0
        %s154 = scalar_lea.vmem %s2, %s153
      $region20: #{basic_block_forward.3} parent=11 // pred_fallthru
        _
    $region12: #{basic_block_forward.3} parent=5 // pred_fallthru
      _
    %p155 = scmp.lt.s32.totalorder %s9, 2
    // Predicated region
    $region21: #{basic_block_forward.3} parent=5 // pred_check
      %p156 = pneg %p155
    $region22: #{basic_block_forward.3} parent=5 // pred_check_branch
      %158 = sbr.rel (%p156) target = $region24
    $region23: #{basic_block_forward.3} parent=5 // pred_region
      // Predicated region
      $region25: #{basic_block_forward.3} parent=23 // pred_check
        %p159 = pneg %p41
      $region26: #{basic_block_forward.3} parent=23 // pred_check_branch
        %161 = sbr.rel (%p159) target = $region28
      $region27: #{basic_block_forward.3} parent=23 // pred_region
        %s162 = smul.u32 8, %s16
        %p163 = scmp.lt.s32.totalorder %s162, 15
        %s164 = scalar_select %p163, %s162, 15
        %s165 = smul.addr %s164, 4
        %s166 = scalar_lea.vmem %s0, %s165
        %s167 = smul.u32 8, %s16
      $region28: #{basic_block_forward.3} parent=23 // pred_fallthru
        _
    $region24: #{basic_block_forward.3} parent=5 // pred_fallthru
      _
    %p168 = scmp.le.s32.totalorder 1, %s9
    %p169 = scmp.lt.s32.totalorder %s9, 3
    %p170 = pnand %p168, %p169
    %p171 = pneg %p170
    // Predicated region
    $region29: #{basic_block_forward.3} parent=5 // pred_check
      _
    $region30: #{basic_block_forward.3} parent=5 // pred_check_branch
      %173 = sbr.rel (%p170) target = $region32
    $region31: #{basic_block_forward.3} parent=5 // pred_region
      %s174 = ssub.s32 %s9, 1
      %s175 = smul.u32 8, %s18
      %p176 = scmp.lt.s32.totalorder %s175, 15
      %s177 = scalar_select %p176, %s175, 15
      %s178 = smul.addr %s177, 4
      %s179 = scalar_lea.vmem %s0, %s178
      %p180 = pneg %p47
      %p181 = pneg %p44
      %p182 = scmp.lt.s32.totalorder %s19, 0
      %s183 = scalar_select %p182, %s19, 0
      %s184 = smul.addr %s183, 4
      %s185 = scalar_lea.vmem %s1, %s184
      %p186 = pneg %p73
      %p187 = pneg %p70
      %p188 = scmp.lt.s32.totalorder %s19, 0
      %s189 = scalar_select %p188, %s19, 0
      %s190 = scalar_lea.vmem %s2, %s189
      %p191 = pneg %p99
      %p192 = pneg %p96
      %p193 = pneg %p127
      %p194 = pneg %p124
      %s195 = smul.u32 8, %s18
      %p196 = scmp.lt.s32.totalorder %s195, 15
      %s197 = scalar_select %p196, %s195, 15
      %p198 = scmp.lt.s32.totalorder %s19, 0
      %s199 = scalar_select %p198, %s19, 0
      %s200 = sadd.s32 %s199, %s197
      %s201 = smul.addr %s200, 4
      %s202 = scalar_lea.vmem %s3, %s201
      %s203 = smul.u32 8, %s18
      %p204 = scmp.lt.s32.totalorder %s203, 15
      %s205 = scalar_select %p204, %s203, 15
      %s206 = smul.addr %s205, 4
      %s207 = scalar_lea.vmem %s0, %s206
      %s208 = smul.u32 8, %s18
      %p209 = scmp.lt.s32.totalorder %s19, 0
      %s210 = scalar_select %p209, %s19, 0
      %s211 = smul.addr %s210, 4
      %s212 = scalar_lea.vmem %s1, %s211
      %p213 = scmp.lt.s32.totalorder %s19, 0
      %s214 = scalar_select %p213, %s19, 0
      %s215 = scalar_lea.vmem %s2, %s214
      %s216 = smul.u32 8, %s18
      %p217 = scmp.lt.s32.totalorder %s216, 15
      %s218 = scalar_select %p217, %s216, 15
      %p219 = scmp.lt.s32.totalorder %s19, 0
      %s220 = scalar_select %p219, %s19, 0
      %s221 = sadd.s32 %s220, %s218
      %s222 = smul.addr %s221, 4
      %s223 = scalar_lea.vmem %s3, %s222
      %s224 = smul.u32 8, %s18
      %v226 = vld [vmem:[%s207] sm:$0xf]
      %v227 = vld [vmem:[%s207 + $0x4] sm:$0xf]
      %v228 = vld [vmem:[%s207 + $0x8] sm:$0xf]
      %v229 = vld [vmem:[%s207 + $0xc] sm:$0xf]
      %v230 = vld [vmem:[%s207 + $0x10] sm:$0xf]
      %v231 = vld [vmem:[%s207 + $0x14] sm:$0xf]
      %v232 = vld [vmem:[%s207 + $0x18] sm:$0xf]
      %v233 = vld [vmem:[%s207 + $0x1c] sm:$0xf]
      %v234 = vld [vmem:[%s212] sm:$0xf]
      %v235 = vld [vmem:[%s212 + $0x4] sm:$0xf]
      %v236 = vld [vmem:[%s212 + $0x8] sm:$0xf]
      %v237 = vld [vmem:[%s212 + $0xc] sm:$0xf]
      %v238 = vld [vmem:[%s212 + $0x10] sm:$0xf]
      %v239 = vld [vmem:[%s212 + $0x14] sm:$0xf]
      %v240 = vld [vmem:[%s212 + $0x18] sm:$0xf]
      %v241 = vld [vmem:[%s212 + $0x1c] sm:$0xf]
      %v242 = vld [vmem:[%s212 + $0x20] sm:$0xf]
      %v243 = vld [vmem:[%s212 + $0x24] sm:$0xf]
      %v244 = vld [vmem:[%s212 + $0x28] sm:$0xf]
      %v245 = vld [vmem:[%s212 + $0x2c] sm:$0xf]
      %v246 = vld [vmem:[%s212 + $0x30] sm:$0xf]
      %v247 = vld [vmem:[%s212 + $0x34] sm:$0xf]
      %v248 = vld [vmem:[%s212 + $0x38] sm:$0xf]
      %v249 = vld [vmem:[%s212 + $0x3c] sm:$0xf]
      %v250 = vld [vmem:[%s215] sm:$0x1]
      %v252 = vlaneseq
      %v253 = vshrl.u32 %v252, 7
      %v254 = vsub.s32 0, %v253
      %v255 = vrot.slane %v250, %v254
      %v265 = vunpack.c.l.b16 %v226
      %v266 = vunpack.c.l.b16 %v227
      %v267 = vunpack.c.l.b16 %v228
      %v268 = vunpack.c.l.b16 %v229
      %v269 = vunpack.c.l.b16 %v230
      %v270 = vunpack.c.l.b16 %v231
      %v271 = vunpack.c.l.b16 %v232
      %v272 = vunpack.c.l.b16 %v233
      %v273 = vpack.c.b16 %v266, %v265
      %v274 = vpack.c.b16 %v268, %v267
      %v275 = vpack.c.b16 %v270, %v269
      %v276 = vpack.c.b16 %v272, %v271
      %v297 = vunpack.c.l.b16 %v234
      %v298 = vunpack.c.l.b16 %v235
      %v299 = vunpack.c.l.b16 %v236
      %v300 = vunpack.c.l.b16 %v237
      %v301 = vunpack.c.l.b16 %v238
      %v302 = vunpack.c.l.b16 %v239
      %v303 = vunpack.c.l.b16 %v240
      %v304 = vunpack.c.l.b16 %v241
      %v305 = vunpack.c.l.b16 %v242
      %v306 = vunpack.c.l.b16 %v243
      %v307 = vunpack.c.l.b16 %v244
      %v308 = vunpack.c.l.b16 %v245
      %v309 = vunpack.c.l.b16 %v246
      %v310 = vunpack.c.l.b16 %v247
      %v311 = vunpack.c.l.b16 %v248
      %v312 = vunpack.c.l.b16 %v249
      %v313 = vpack.c.b16 %v298, %v297
      %v314 = vpack.c.b16 %v300, %v299
      %v315 = vpack.c.b16 %v302, %v301
      %v316 = vpack.c.b16 %v304, %v303
      %v317 = vpack.c.b16 %v306, %v305
      %v318 = vpack.c.b16 %v308, %v307
      %v319 = vpack.c.b16 %v310, %v309
      %v320 = vpack.c.b16 %v312, %v311
      %329 = vmatprep.subr.bf16.mxu0 0
      %330 = vmatpush1.bf16.msra.mxu0 %v320
      %331 = vmatprep.subr.bf16.mxu0 0
      %332 = vmatpush1.bf16.msra.mxu0 %v319
      %333 = vmatprep.subr.bf16.mxu0 0
      %334 = vmatpush1.bf16.msra.mxu0 %v318
      %335 = vmatprep.subr.bf16.mxu0 0
      %336 = vmatpush1.bf16.msra.mxu0 %v317
      %337 = vmatprep.subr.bf16.mxu0 0
      %338 = vmatpush1.bf16.msra.mxu0 %v316
      %339 = vmatprep.subr.bf16.mxu0 0
      %340 = vmatpush1.bf16.msra.mxu0 %v315
      %341 = vmatprep.subr.bf16.mxu0 0
      %342 = vmatpush1.bf16.msra.mxu0 %v314
      %343 = vmatprep.subr.bf16.mxu0 0
      %344 = vmatpush1.bf16.msra.mxu0 %v313
      %345 = vmatprep.subr.bf16.mxu0 0
      %346 = vmatpush2.bf16.msra.mxu0 0
      %347 = vmatprep.subr.bf16.mxu0 0
      %348 = vmatpush2.bf16.msra.mxu0 0
      %349 = vmatprep.subr.bf16.mxu0 0
      %350 = vmatpush2.bf16.msra.mxu0 0
      %351 = vmatprep.subr.bf16.mxu0 0
      %352 = vmatpush2.bf16.msra.mxu0 0
      %353 = vmatprep.subr.bf16.mxu0 0
      %354 = vmatpush2.bf16.msra.mxu0 0
      %355 = vmatprep.subr.bf16.mxu0 0
      %356 = vmatpush2.bf16.msra.mxu0 0
      %357 = vmatprep.subr.bf16.mxu0 0
      %358 = vmatpush2.bf16.msra.mxu0 0
      %359 = vmatprep.subr.bf16.mxu0 0
      %360 = vmatpush2.bf16.msra.mxu0 0
      %361 = vmatprep.mubr.bf16.mxu0 0
      %362 = vmatmul.mubr.bf16.gmra.mxu0 %v273
      %v363 = vpop.f32.mrf.mxu0
      %v364 = vadd.f32 %v255, %v363
      %v365 = vpop.f32.mrf.mxu0
      %v366 = vpop.f32.mrf.mxu0
      %v367 = vadd.f32 %v255, %v366
      %v368 = vpop.f32.mrf.mxu0
      %369 = vmatprep.mubr.bf16.mxu0 0
      %370 = vmatmul.mubr.bf16.gmra.mxu0 %v274
      %v371 = vpop.f32.mrf.mxu0
      %v372 = vadd.f32 %v255, %v371
      %v373 = vpop.f32.mrf.mxu0
      %v374 = vpop.f32.mrf.mxu0
      %v375 = vadd.f32 %v255, %v374
      %v376 = vpop.f32.mrf.mxu0
      %377 = vmatprep.mubr.bf16.mxu0 0
      %378 = vmatmul.mubr.bf16.gmra.mxu0 %v275
      %v379 = vpop.f32.mrf.mxu0
      %v380 = vadd.f32 %v255, %v379
      %v381 = vpop.f32.mrf.mxu0
      %v382 = vpop.f32.mrf.mxu0
      %v383 = vadd.f32 %v255, %v382
      %v384 = vpop.f32.mrf.mxu0
      %385 = vmatprep.mubr.bf16.mxu0 0
      %386 = vmatmul.mubr.bf16.gmra.mxu0 %v276
      %v387 = vpop.f32.mrf.mxu0
      %v388 = vadd.f32 %v255, %v387
      %v389 = vpop.f32.mrf.mxu0
      %v390 = vpop.f32.mrf.mxu0
      %v391 = vadd.f32 %v255, %v390
      %v392 = vpop.f32.mrf.mxu0
      %393 = vdwg.mxu0
      %v394 = vpack.c.bf16 %v367, %v364
      %v395 = vpack.c.bf16 %v375, %v372
      %v396 = vpack.c.bf16 %v383, %v380
      %v397 = vpack.c.bf16 %v391, %v388
      %v402 = vunpack.c.l.b16 %v394
      %v403 = vunpack.c.h.b16 %v394
      %v404 = vunpack.c.l.b16 %v395
      %v405 = vunpack.c.h.b16 %v395
      %v406 = vunpack.c.l.b16 %v396
      %v407 = vunpack.c.h.b16 %v396
      %v408 = vunpack.c.l.b16 %v397
      %v409 = vunpack.c.h.b16 %v397
      %v410 = vpack.c.b16 %v402, %v402
      %v411 = vpack.c.b16 %v403, %v403
      %v412 = vpack.c.b16 %v404, %v404
      %v413 = vpack.c.b16 %v405, %v405
      %v414 = vpack.c.b16 %v406, %v406
      %v415 = vpack.c.b16 %v407, %v407
      %v416 = vpack.c.b16 %v408, %v408
      %v417 = vpack.c.b16 %v409, %v409
      %426 = vst [vmem:[%s223] sm:$0xf] %v410
      %427 = vst [vmem:[%s223 + $0x4] sm:$0xf] %v411
      %428 = vst [vmem:[%s223 + $0x8] sm:$0xf] %v412
      %429 = vst [vmem:[%s223 + $0xc] sm:$0xf] %v413
      %430 = vst [vmem:[%s223 + $0x10] sm:$0xf] %v414
      %431 = vst [vmem:[%s223 + $0x14] sm:$0xf] %v415
      %432 = vst [vmem:[%s223 + $0x18] sm:$0xf] %v416
      %433 = vst [vmem:[%s223 + $0x1c] sm:$0xf] %v417
      %s434 = smul.u32 8, %s18
      %p435 = scmp.lt.s32.totalorder %s434, 15
      %s436 = scalar_select %p435, %s434, 15
      %p437 = scmp.lt.s32.totalorder %s19, 0
      %s438 = scalar_select %p437, %s19, 0
      %s439 = sadd.s32 %s438, %s436
      %s440 = smul.addr %s439, 4
      %s441 = scalar_lea.vmem %s3, %s440
      // Predicated region
      $region33: #{basic_block_forward.3} parent=31 // pred_check
        %p442 = pneg %p124
      $region34: #{basic_block_forward.3} parent=31 // pred_check_branch
        %444 = sbr.rel (%p442) target = $region36
      $region35: #{basic_block_forward.3} parent=31 // pred_region
        %s445 = smul.u32 8, %s18
      $region36: #{basic_block_forward.3} parent=31 // pred_fallthru
        _
    $region32: #{basic_block_forward.3} parent=5 // pred_fallthru
      _
    %p446 = scmp.le.s32.totalorder 2, %s9
    // Predicated region
    $region37: #{basic_block_forward.3} parent=5 // pred_check
      %p447 = pneg %p446
    $region38: #{basic_block_forward.3} parent=5 // pred_check_branch
      %449 = sbr.rel (%p447) target = $region40
    $region39: #{basic_block_forward.3} parent=5 // pred_region
      %s450 = ssub.s32 %s9, 2
      // Predicated region
      $region41: #{basic_block_forward.3} parent=39 // pred_check
        %p451 = pneg %p130
      $region42: #{basic_block_forward.3} parent=39 // pred_check_branch
        %453 = sbr.rel (%p451) target = $region44
      $region43: #{basic_block_forward.3} parent=39 // pred_region
        %s454 = smul.u32 8, %s20
        %p455 = scmp.lt.s32.totalorder %s454, 15
        %s456 = scalar_select %p455, %s454, 15
        %p457 = scmp.lt.s32.totalorder %s21, 0
        %s458 = scalar_select %p457, %s21, 0
        %s459 = sadd.s32 %s458, %s456
        %s460 = smul.addr %s459, 4
        %s461 = scalar_lea.vmem %s3, %s460
      $region44: #{basic_block_forward.3} parent=39 // pred_fallthru
        _
    $region40: #{basic_block_forward.3} parent=5 // pred_fallthru
      _
  $region6: #{basic_block_forward.3} parent=0 // loop_footer
    %s13 = sadd.s32 1, %s9
  $region7: #{basic_block_forward.3} parent=0 // loop_footer_branch
    %8 = sbr.rel target = $region3
  $region8: #{basic_block_forward.3} parent=0 // loop_exit
    _

// kernel: basic_block_forward.4
$region0: #{basic_block_forward.4}
  #allocation0 [shape = 'u32[]', space=smem, size = 0x4, offset = 0x4, fixed_abs, tag = 'smem constant byte address 0x4 - core index']
  #allocation1 [shape = 'u32[144,128]{1,0:T(1,128)}', space=vmem, size = 0x12000, scoped, tag = 'internal scratch']
  %s0 = inlined_call_operand.vmem [shape: bf16[128,144], index: 0, kind: input, shape index: {}]
  %s1 = inlined_call_operand.vmem [shape: bf16[144,128], index: 1, kind: input, shape index: {}]
  %s2 = inlined_call_operand.vmem [shape: f32[1,128], index: 2, kind: input, shape index: {}]
  %s3 = inlined_call_operand.vmem [shape: bf16[128,128], index: 3, kind: output, shape index: {}]
  %s4 = sld [smem:[#allocation0]]
  $region45: #{basic_block_forward.4} parent=0
    _
  %s6 = ssub.s32 1, %s4
  %s7 = scalar_select 0, %s6, %s4
  loop: start=0, step=1, limit=4
  $region2: #{basic_block_forward.4} parent=0 // loop_pre_header
    _
  $region3: #{basic_block_forward.4} parent=0 // loop_header
    %s9 = sphi 0, %s13
    %p10 = scmp.ge.s32.totalorder %s9, 4
    %s16 = sphi 0, %s28
    %s17 = sphi 0, %s24
    %s18 = sphi 0, %s16
    %s19 = sphi 0, %s17
    %s20 = sphi 0, %s18
    %s21 = sphi 0, %s19
    %s31 = sphi 0, %s33
    %s34 = sphi 0, %s31
    %s35 = sphi 0, %s34
    %s51 = sphi 0, %s35
    %s57 = sphi 0, %s59
    %s60 = sphi 0, %s57
    %s61 = sphi 0, %s60
    %s77 = sphi 0, %s61
    %s83 = sphi 0, %s85
    %s86 = sphi 0, %s83
    %s87 = sphi 0, %s86
    %s103 = sphi 0, %s87
    %s111 = sphi 0, %s113
    %s114 = sphi 0, %s111
    %s115 = sphi 0, %s114
    %s131 = sphi 0, %s115
  $region4: #{basic_block_forward.4} parent=0 // loop_header_branch
    %12 = sbr.rel (%p10) target = $region8
  $region5: #{basic_block_forward.4} parent=0 // loop_body
    %s14 = ssub.s32 %s9, 1
    %s15 = ssub.s32 %s9, 2
    %s22 = sadd.s32 1, %s17
    %p23 = scmp.ge.s32.totalorder %s22, 1
    %s24 = scalar_select %p23, 0, %s22
    %s25 = sadd.s32 1, %s16
    %s26 = scalar_select %p23, %s25, %s16
    %p27 = scmp.ge.s32.totalorder %s26, 2
    %s28 = scalar_select %p27, 0, %s26
    %s29 = ssub.s32 %s16, %s28
    %p30 = scmp.eq.s32.totalorder %s29, 0
    %s32 = sadd.s32 %s31, 1
    %s33 = scalar_select %p30, %s31, %s32
    %p36 = pneg %p30
    %p37 = scmp.eq.s32.totalorder %s9, 1
    %p38 = por %p36, %p37
    %p39 = scmp.ne.s32.totalorder %s31, %s34
    %p40 = scmp.eq.s32.totalorder %s9, 0
    %p41 = por %p39, %p40
    %p42 = scmp.ne.s32.totalorder %s31, %s34
    %p43 = scmp.eq.s32.totalorder %s14, 1
    %p44 = por %p42, %p43
    %p45 = scmp.ne.s32.totalorder %s34, %s35
    %p46 = scmp.eq.s32.totalorder %s14, 0
    %p47 = por %p45, %p46
    %p48 = scmp.ne.s32.totalorder %s34, %s35
    %p49 = scmp.eq.s32.totalorder %s15, 1
    %p50 = por %p48, %p49
    %p52 = scmp.ne.s32.totalorder %s35, %s51
    %p53 = scmp.eq.s32.totalorder %s15, 0
    %p54 = por %p52, %p53
    %s55 = ssub.s32 %s17, %s24
    %p56 = scmp.eq.s32.totalorder %s55, 0
    %s58 = sadd.s32 %s57, 1
    %s59 = scalar_select %p56, %s57, %s58
    %p62 = pneg %p56
    %p63 = scmp.eq.s32.totalorder %s9, 1
    %p64 = por %p62, %p63
    %p65 = scmp.ne.s32.totalorder %s57, %s60
    %p66 = scmp.eq.s32.totalorder %s9, 0
    %p67 = por %p65, %p66
    %p68 = scmp.ne.s32.totalorder %s57, %s60
    %p69 = scmp.eq.s32.totalorder %s14, 1
    %p70 = por %p68, %p69
    %p71 = scmp.ne.s32.totalorder %s60, %s61
    %p72 = scmp.eq.s32.totalorder %s14, 0
    %p73 = por %p71, %p72
    %p74 = scmp.ne.s32.totalorder %s60, %s61
    %p75 = scmp.eq.s32.totalorder %s15, 1
    %p76 = por %p74, %p75
    %p78 = scmp.ne.s32.totalorder %s61, %s77
    %p79 = scmp.eq.s32.totalorder %s15, 0
    %p80 = por %p78, %p79
    %s81 = ssub.s32 %s17, %s24
    %p82 = scmp.eq.s32.totalorder %s81, 0
    %s84 = sadd.s32 %s83, 1
    %s85 = scalar_select %p82, %s83, %s84
    %p88 = pneg %p82
    %p89 = scmp.eq.s32.totalorder %s9, 1
    %p90 = por %p88, %p89
    %p91 = scmp.ne.s32.totalorder %s83, %s86
    %p92 = scmp.eq.s32.totalorder %s9, 0
    %p93 = por %p91, %p92
    %p94 = scmp.ne.s32.totalorder %s83, %s86
    %p95 = scmp.eq.s32.totalorder %s14, 1
    %p96 = por %p94, %p95
    %p97 = scmp.ne.s32.totalorder %s86, %s87
    %p98 = scmp.eq.s32.totalorder %s14, 0
    %p99 = por %p97, %p98
    %p100 = scmp.ne.s32.totalorder %s86, %s87
    %p101 = scmp.eq.s32.totalorder %s15, 1
    %p102 = por %p100, %p101
    %p104 = scmp.ne.s32.totalorder %s87, %s103
    %p105 = scmp.eq.s32.totalorder %s15, 0
    %p106 = por %p104, %p105
    %s107 = ssub.s32 %s16, %s28
    %s108 = ssub.s32 %s17, %s24
    %s109 = sor.u32 %s107, %s108
    %p110 = scmp.eq.s32.totalorder %s109, 0
    %s112 = sadd.s32 %s111, 1
    %s113 = scalar_select %p110, %s111, %s112
    %p116 = pneg %p110
    %p117 = scmp.eq.s32.totalorder %s9, 1
    %p118 = por %p116, %p117
    %p119 = scmp.ne.s32.totalorder %s111, %s114
    %p120 = scmp.eq.s32.totalorder %s9, 0
    %p121 = por %p119, %p120
    %p122 = scmp.ne.s32.totalorder %s111, %s114
    %p123 = scmp.eq.s32.totalorder %s14, 1
    %p124 = por %p122, %p123
    %p125 = scmp.ne.s32.totalorder %s114, %s115
    %p126 = scmp.eq.s32.totalorder %s14, 0
    %p127 = por %p125, %p126
    %p128 = scmp.ne.s32.totalorder %s114, %s115
    %p129 = scmp.eq.s32.totalorder %s15, 1
    %p130 = por %p128, %p129
    %p132 = scmp.ne.s32.totalorder %s115, %s131
    %p133 = scmp.eq.s32.totalorder %s15, 0
    %p134 = por %p132, %p133
    %p135 = scmp.le.s32.totalorder 1, %s9
    %p136 = scmp.lt.s32.totalorder %s9, 3
    %p137 = pnand %p135, %p136
    %p138 = pneg %p137
    // Predicated region
    $region9: #{basic_block_forward.4} parent=5 // pred_check
      _
    $region10: #{basic_block_forward.4} parent=5 // pred_check_branch
      %140 = sbr.rel (%p137) target = $region12
    $region11: #{basic_block_forward.4} parent=5 // pred_region
      %s141 = ssub.s32 %s9, 1
      // Predicated region
      $region13: #{basic_block_forward.4} parent=11 // pred_check
        %p142 = pneg %p73
      $region14: #{basic_block_forward.4} parent=11 // pred_check_branch
        %144 = sbr.rel (%p142) target = $region16
      $region15: #{basic_block_forward.4} parent=11 // pred_region
        %p145 = scmp.lt.s32.totalorder %s19, 0
        %s146 = scalar_select %p145, %s19, 0
        %s147 = smul.addr %s146, 4
        %s148 = scalar_lea.vmem %s1, %s147
      $region16: #{basic_block_forward.4} parent=11 // pred_fallthru
        _
      // Predicated region
      $region17: #{basic_block_forward.4} parent=11 // pred_check
        %p149 = pneg %p99
      $region18: #{basic_block_forward.4} parent=11 // pred_check_branch
        %151 = sbr.rel (%p149) target = $region20
      $region19: #{basic_block_forward.4} parent=11 // pred_region
        %p152 = scmp.lt.s32.totalorder %s19, 0
        %s153 = scalar_select %p152, %s19, 0
        %s154 = scalar_lea.vmem %s2, %s153
      $region20: #{basic_block_forward.4} parent=11 // pred_fallthru
        _
    $region12: #{basic_block_forward.4} parent=5 // pred_fallthru
      _
    %p155 = scmp.lt.s32.totalorder %s9, 2
    // Predicated region
    $region21: #{basic_block_forward.4} parent=5 // pred_check
      %p156 = pneg %p155
    $region22: #{basic_block_forward.4} parent=5 // pred_check_branch
      %158 = sbr.rel (%p156) target = $region24
    $region23: #{basic_block_forward.4} parent=5 // pred_region
      // Predicated region
      $region25: #{basic_block_forward.4} parent=23 // pred_check
        %p159 = pneg %p41
      $region26: #{basic_block_forward.4} parent=23 // pred_check_branch
        %161 = sbr.rel (%p159) target = $region28
      $region27: #{basic_block_forward.4} parent=23 // pred_region
        %s162 = smul.u32 8, %s16
        %p163 = scmp.lt.s32.totalorder %s162, 15
        %s164 = scalar_select %p163, %s162, 15
        %s165 = smul.addr %s164, 2
        %s166 = smul.addr %s165, 4
        %s167 = scalar_lea.vmem %s0, %s166
        %s168 = smul.u32 8, %s16
      $region28: #{basic_block_forward.4} parent=23 // pred_fallthru
        _
    $region24: #{basic_block_forward.4} parent=5 // pred_fallthru
      _
    %p169 = scmp.le.s32.totalorder 1, %s9
    %p170 = scmp.lt.s32.totalorder %s9, 3
    %p171 = pnand %p169, %p170
    %p172 = pneg %p171
    // Predicated region
    $region29: #{basic_block_forward.4} parent=5 // pred_check
      _
    $region30: #{basic_block_forward.4} parent=5 // pred_check_branch
      %174 = sbr.rel (%p171) target = $region32
    $region31: #{basic_block_forward.4} parent=5 // pred_region
      %s175 = ssub.s32 %s9, 1
      %s176 = smul.u32 8, %s18
      %p177 = scmp.lt.s32.totalorder %s176, 15
      %s178 = scalar_select %p177, %s176, 15
      %s179 = smul.addr %s178, 2
      %s180 = smul.addr %s179, 4
      %s181 = scalar_lea.vmem %s0, %s180
      %p182 = pneg %p47
      %p183 = pneg %p44
      %p184 = scmp.lt.s32.totalorder %s19, 0
      %s185 = scalar_select %p184, %s19, 0
      %s186 = smul.addr %s185, 4
      %s187 = scalar_lea.vmem %s1, %s186
      %p188 = pneg %p73
      %p189 = pneg %p70
      %p190 = scmp.lt.s32.totalorder %s19, 0
      %s191 = scalar_select %p190, %s19, 0
      %s192 = scalar_lea.vmem %s2, %s191
      %p193 = pneg %p99
      %p194 = pneg %p96
      %p195 = pneg %p127
      %p196 = pneg %p124
      %s197 = smul.u32 8, %s18
      %p198 = scmp.lt.s32.totalorder %s197, 15
      %s199 = scalar_select %p198, %s197, 15
      %p200 = scmp.lt.s32.totalorder %s19, 0
      %s201 = scalar_select %p200, %s19, 0
      %s202 = sadd.s32 %s201, %s199
      %s203 = smul.addr %s202, 4
      %s204 = scalar_lea.vmem %s3, %s203
      %s205 = smul.u32 8, %s18
      %p206 = scmp.lt.s32.totalorder %s205, 15
      %s207 = scalar_select %p206, %s205, 15
      %s208 = smul.addr %s207, 2
      %s209 = smul.addr %s208, 4
      %s210 = scalar_lea.vmem %s0, %s209
      %s211 = smul.u32 8, %s18
      %p212 = scmp.lt.s32.totalorder %s19, 0
      %s213 = scalar_select %p212, %s19, 0
      %s214 = smul.addr %s213, 4
      %s215 = scalar_lea.vmem %s1, %s214
      %p216 = scmp.lt.s32.totalorder %s19, 0
      %s217 = scalar_select %p216, %s19, 0
      %s218 = scalar_lea.vmem %s2, %s217
      %s219 = smul.u32 8, %s18
      %p220 = scmp.lt.s32.totalorder %s219, 15
      %s221 = scalar_select %p220, %s219, 15
      %p222 = scmp.lt.s32.totalorder %s19, 0
      %s223 = scalar_select %p222, %s19, 0
      %s224 = sadd.s32 %s223, %s221
      %s225 = smul.addr %s224, 4
      %s226 = scalar_lea.vmem %s3, %s225
      %s227 = smul.u32 8, %s18
      %v229 = vld [vmem:[%s210] sm:$0xff]
      %v230 = vld [vmem:[%s210 + $0x8] sm:$0xff]
      %v231 = vld [vmem:[%s210 + $0x10] sm:$0xff]
      %v232 = vld [vmem:[%s210 + $0x18] sm:$0xff]
      %v233 = vld [vmem:[%s210 + $0x20] sm:$0xff]
      %v234 = vld [vmem:[%s210 + $0x28] sm:$0xff]
      %v235 = vld [vmem:[%s210 + $0x30] sm:$0xff]
      %v236 = vld [vmem:[%s210 + $0x38] sm:$0xff]
      %v237 = vld [vmem:[%s215] sm:$0xf]
      %v238 = vld [vmem:[%s215 + $0x4] sm:$0xf]
      %v239 = vld [vmem:[%s215 + $0x8] sm:$0xf]
      %v240 = vld [vmem:[%s215 + $0xc] sm:$0xf]
      %v241 = vld [vmem:[%s215 + $0x10] sm:$0xf]
      %v242 = vld [vmem:[%s215 + $0x14] sm:$0xf]
      %v243 = vld [vmem:[%s215 + $0x18] sm:$0xf]
      %v244 = vld [vmem:[%s215 + $0x1c] sm:$0xf]
      %v245 = vld [vmem:[%s215 + $0x20] sm:$0xf]
      %v246 = vld [vmem:[%s215 + $0x24] sm:$0xf]
      %v247 = vld [vmem:[%s215 + $0x28] sm:$0xf]
      %v248 = vld [vmem:[%s215 + $0x2c] sm:$0xf]
      %v249 = vld [vmem:[%s215 + $0x30] sm:$0xf]
      %v250 = vld [vmem:[%s215 + $0x34] sm:$0xf]
      %v251 = vld [vmem:[%s215 + $0x38] sm:$0xf]
      %v252 = vld [vmem:[%s215 + $0x3c] sm:$0xf]
      %v253 = vld [vmem:[%s215 + $0x40] sm:$0xf]
      %v254 = vld [vmem:[%s215 + $0x44] sm:$0xf]
      %v255 = vld [vmem:[%s218] sm:$0x1]
      %v257 = vlaneseq
      %v258 = vshrl.u32 %v257, 7
      %v259 = vsub.s32 0, %v258
      %v260 = vrot.slane %v255, %v259
      %v270 = vunpack.c.l.b16 %v229
      %v271 = vunpack.c.h.b16 %v229
      %v272 = vunpack.c.l.b16 %v230
      %v273 = vunpack.c.h.b16 %v230
      %v274 = vunpack.c.l.b16 %v231
      %v275 = vunpack.c.h.b16 %v231
      %v276 = vunpack.c.l.b16 %v232
      %v277 = vunpack.c.h.b16 %v232
      %v278 = vunpack.c.l.b16 %v233
      %v279 = vunpack.c.h.b16 %v233
      %v280 = vunpack.c.l.b16 %v234
      %v281 = vunpack.c.h.b16 %v234
      %v282 = vunpack.c.l.b16 %v235
      %v283 = vunpack.c.h.b16 %v235
      %v284 = vunpack.c.l.b16 %v236
      %v285 = vunpack.c.h.b16 %v236
      %v286 = vpack.c.b16 %v272, %v270
      %v287 = vpack.c.b16 %v273, %v271
      %v288 = vpack.c.b16 %v276, %v274
      %v289 = vpack.c.b16 %v277, %v275
      %v290 = vpack.c.b16 %v280, %v278
      %v291 = vpack.c.b16 %v281, %v279
      %v292 = vpack.c.b16 %v284, %v282
      %v293 = vpack.c.b16 %v285, %v283
      %v316 = vunpack.c.l.b16 %v237
      %v317 = vunpack.c.l.b16 %v238
      %v318 = vunpack.c.l.b16 %v239
      %v319 = vunpack.c.l.b16 %v240
      %v320 = vunpack.c.l.b16 %v241
      %v321 = vunpack.c.l.b16 %v242
      %v322 = vunpack.c.l.b16 %v243
      %v323 = vunpack.c.l.b16 %v244
      %v324 = vunpack.c.l.b16 %v245
      %v325 = vunpack.c.l.b16 %v246
      %v326 = vunpack.c.l.b16 %v247
      %v327 = vunpack.c.l.b16 %v248
      %v328 = vunpack.c.l.b16 %v249
      %v329 = vunpack.c.l.b16 %v250
      %v330 = vunpack.c.l.b16 %v251
      %v331 = vunpack.c.l.b16 %v252
      %v332 = vunpack.c.l.b16 %v253
      %v333 = vunpack.c.l.b16 %v254
      %v334 = vpack.c.b16 %v317, %v316
      %v335 = vpack.c.b16 %v319, %v318
      %v336 = vpack.c.b16 %v321, %v320
      %v337 = vpack.c.b16 %v323, %v322
      %v338 = vpack.c.b16 %v325, %v324
      %v339 = vpack.c.b16 %v327, %v326
      %v340 = vpack.c.b16 %v329, %v328
      %v341 = vpack.c.b16 %v331, %v330
      %v342 = vpack.c.b16 %v333, %v332
      %vm352 = vcmask 130048
      %v354 = vsel %vm352, %v287, 0
      %v357 = vsel %vm352, %v289, 0
      %v360 = vsel %vm352, %v291, 0
      %v363 = vsel %vm352, %v293, 0
      %365 = vmatprep.subr.bf16.mxu0 0
      %366 = vmatpush1.bf16.msra.mxu0 %v341
      %367 = vmatprep.subr.bf16.mxu0 0
      %368 = vmatpush1.bf16.msra.mxu0 %v340
      %369 = vmatprep.subr.bf16.mxu0 0
      %370 = vmatpush1.bf16.msra.mxu0 %v339
      %371 = vmatprep.subr.bf16.mxu0 0
      %372 = vmatpush1.bf16.msra.mxu0 %v338
      %373 = vmatprep.subr.bf16.mxu0 0
      %374 = vmatpush1.bf16.msra.mxu0 %v337
      %375 = vmatprep.subr.bf16.mxu0 0
      %376 = vmatpush1.bf16.msra.mxu0 %v336
      %377 = vmatprep.subr.bf16.mxu0 0
      %378 = vmatpush1.bf16.msra.mxu0 %v335
      %379 = vmatprep.subr.bf16.mxu0 0
      %380 = vmatpush1.bf16.msra.mxu0 %v334
      %381 = vmatprep.subr.bf16.mxu0 0
      %382 = vmatpush2.bf16.msra.mxu0 0
      %383 = vmatprep.subr.bf16.mxu0 0
      %384 = vmatpush2.bf16.msra.mxu0 0
      %385 = vmatprep.subr.bf16.mxu0 0
      %386 = vmatpush2.bf16.msra.mxu0 0
      %387 = vmatprep.subr.bf16.mxu0 0
      %388 = vmatpush2.bf16.msra.mxu0 0
      %389 = vmatprep.subr.bf16.mxu0 0
      %390 = vmatpush2.bf16.msra.mxu0 0
      %391 = vmatprep.subr.bf16.mxu0 0
      %392 = vmatpush2.bf16.msra.mxu0 0
      %393 = vmatprep.subr.bf16.mxu0 0
      %394 = vmatpush2.bf16.msra.mxu0 0
      %395 = vmatprep.subr.bf16.mxu0 0
      %396 = vmatpush2.bf16.msra.mxu0 %v342
      %397 = vmatprep.mubr.bf16.mxu0 %v354
      %398 = vmatmul.mubr.bf16.gmra.mxu0 %v286
      %v399 = vpop.f32.mrf.mxu0
      %v400 = vadd.f32 %v260, %v399
      %v401 = vpop.f32.mrf.mxu0
      %v402 = vpop.f32.mrf.mxu0
      %v403 = vadd.f32 %v260, %v402
      %v404 = vpop.f32.mrf.mxu0
      %405 = vmatprep.mubr.bf16.mxu0 %v357
      %406 = vmatmul.mubr.bf16.gmra.mxu0 %v288
      %v407 = vpop.f32.mrf.mxu0
      %v408 = vadd.f32 %v260, %v407
      %v409 = vpop.f32.mrf.mxu0
      %v410 = vpop.f32.mrf.mxu0
      %v411 = vadd.f32 %v260, %v410
      %v412 = vpop.f32.mrf.mxu0
      %413 = vmatprep.mubr.bf16.mxu0 %v360
      %414 = vmatmul.mubr.bf16.gmra.mxu0 %v290
      %v415 = vpop.f32.mrf.mxu0
      %v416 = vadd.f32 %v260, %v415
      %v417 = vpop.f32.mrf.mxu0
      %v418 = vpop.f32.mrf.mxu0
      %v419 = vadd.f32 %v260, %v418
      %v420 = vpop.f32.mrf.mxu0
      %421 = vmatprep.mubr.bf16.mxu0 %v363
      %422 = vmatmul.mubr.bf16.gmra.mxu0 %v292
      %v423 = vpop.f32.mrf.mxu0
      %v424 = vadd.f32 %v260, %v423
      %v425 = vpop.f32.mrf.mxu0
      %v426 = vpop.f32.mrf.mxu0
      %v427 = vadd.f32 %v260, %v426
      %v428 = vpop.f32.mrf.mxu0
      %429 = vdwg.mxu0
      %v430 = vmax.f32 %v400, 0.0
      %v431 = vmax.f32 %v403, 0.0
      %v432 = vmax.f32 %v408, 0.0
      %v433 = vmax.f32 %v411, 0.0
      %v434 = vmax.f32 %v416, 0.0
      %v435 = vmax.f32 %v419, 0.0
      %v436 = vmax.f32 %v424, 0.0
      %v437 = vmax.f32 %v427, 0.0
      %v438 = vpack.c.bf16 %v431, %v430
      %v439 = vpack.c.bf16 %v433, %v432
      %v440 = vpack.c.bf16 %v435, %v434
      %v441 = vpack.c.bf16 %v437, %v436
      %v446 = vunpack.c.l.b16 %v438
      %v447 = vunpack.c.h.b16 %v438
      %v448 = vunpack.c.l.b16 %v439
      %v449 = vunpack.c.h.b16 %v439
      %v450 = vunpack.c.l.b16 %v440
      %v451 = vunpack.c.h.b16 %v440
      %v452 = vunpack.c.l.b16 %v441
      %v453 = vunpack.c.h.b16 %v441
      %v454 = vpack.c.b16 %v446, %v446
      %v455 = vpack.c.b16 %v447, %v447
      %v456 = vpack.c.b16 %v448, %v448
      %v457 = vpack.c.b16 %v449, %v449
      %v458 = vpack.c.b16 %v450, %v450
      %v459 = vpack.c.b16 %v451, %v451
      %v460 = vpack.c.b16 %v452, %v452
      %v461 = vpack.c.b16 %v453, %v453
      %470 = vst [vmem:[%s226] sm:$0xf] %v454
      %471 = vst [vmem:[%s226 + $0x4] sm:$0xf] %v455
      %472 = vst [vmem:[%s226 + $0x8] sm:$0xf] %v456
      %473 = vst [vmem:[%s226 + $0xc] sm:$0xf] %v457
      %474 = vst [vmem:[%s226 + $0x10] sm:$0xf] %v458
      %475 = vst [vmem:[%s226 + $0x14] sm:$0xf] %v459
      %476 = vst [vmem:[%s226 + $0x18] sm:$0xf] %v460
      %477 = vst [vmem:[%s226 + $0x1c] sm:$0xf] %v461
      %s478 = smul.u32 8, %s18
      %p479 = scmp.lt.s32.totalorder %s478, 15
      %s480 = scalar_select %p479, %s478, 15
      %p481 = scmp.lt.s32.totalorder %s19, 0
      %s482 = scalar_select %p481, %s19, 0
      %s483 = sadd.s32 %s482, %s480
      %s484 = smul.addr %s483, 4
      %s485 = scalar_lea.vmem %s3, %s484
      // Predicated region
      $region33: #{basic_block_forward.4} parent=31 // pred_check
        %p486 = pneg %p124
      $region34: #{basic_block_forward.4} parent=31 // pred_check_branch
        %488 = sbr.rel (%p486) target = $region36
      $region35: #{basic_block_forward.4} parent=31 // pred_region
        %s489 = smul.u32 8, %s18
      $region36: #{basic_block_forward.4} parent=31 // pred_fallthru
        _
    $region32: #{basic_block_forward.4} parent=5 // pred_fallthru
      _
    %p490 = scmp.le.s32.totalorder 2, %s9
    // Predicated region
    $region37: #{basic_block_forward.4} parent=5 // pred_check
      %p491 = pneg %p490
    $region38: #{basic_block_forward.4} parent=5 // pred_check_branch
      %493 = sbr.rel (%p491) target = $region40
    $region39: #{basic_block_forward.4} parent=5 // pred_region
      %s494 = ssub.s32 %s9, 2
      // Predicated region
      $region41: #{basic_block_forward.4} parent=39 // pred_check
        %p495 = pneg %p130
      $region42: #{basic_block_forward.4} parent=39 // pred_check_branch
        %497 = sbr.rel (%p495) target = $region44
      $region43: #{basic_block_forward.4} parent=39 // pred_region
        %s498 = smul.u32 8, %s20
        %p499 = scmp.lt.s32.totalorder %s498, 15
        %s500 = scalar_select %p499, %s498, 15
        %p501 = scmp.lt.s32.totalorder %s21, 0
        %s502 = scalar_select %p501, %s21, 0
        %s503 = sadd.s32 %s502, %s500
        %s504 = smul.addr %s503, 4
        %s505 = scalar_lea.vmem %s3, %s504
      $region44: #{basic_block_forward.4} parent=39 // pred_fallthru
        _
    $region40: #{basic_block_forward.4} parent=5 // pred_fallthru
      _
  $region6: #{basic_block_forward.4} parent=0 // loop_footer
    %s13 = sadd.s32 1, %s9
  $region7: #{basic_block_forward.4} parent=0 // loop_footer_branch
    %8 = sbr.rel target = $region3
  $region8: #{basic_block_forward.4} parent=0 // loop_exit
    _

// kernel: basic_block_forward.5
$region0: #{basic_block_forward.5}
  #allocation0 [shape = 'u32[]', space=smem, size = 0x4, offset = 0x4, fixed_abs, tag = 'smem constant byte address 0x4 - core index']
  #allocation1 [shape = 'u32[144,128]{1,0:T(1,128)}', space=vmem, size = 0x12000, scoped, tag = 'internal scratch']
  %s0 = inlined_call_operand.vmem [shape: bf16[128,288], index: 0, kind: input, shape index: {}]
  %s1 = inlined_call_operand.vmem [shape: bf16[288,128], index: 1, kind: input, shape index: {}]
  %s2 = inlined_call_operand.vmem [shape: f32[1,128], index: 2, kind: input, shape index: {}]
  %s3 = inlined_call_operand.vmem [shape: bf16[128,128], index: 3, kind: input, shape index: {}]
  %s4 = inlined_call_operand.hbm [shape: f32[128,128], index: 4, kind: output, shape index: {}]
  %s5 = sld [smem:[#allocation0]]
  $region49: #{basic_block_forward.5} parent=0
    _
  %s7 = ssub.s32 1, %s5
  %s8 = scalar_select 0, %s7, %s5
  $region1: #{basic_block_forward.5} parent=0
    #allocation2 [shape = 'u8[65536]{0}', space=vmem, size = 0x10000, scoped, tag = 'output window, operand 0']
    #allocation3 [shape = 's32[2]{0}', space=sflag, size = 0x8, scoped, tag = 'scoped memory for basic_block_forward.5']
    %9 = vsyncpa [#allocation3], 0
    %s10 = scalar_lea.sflag [#allocation3], 1
    %11 = vsyncpa %s10, 0
    loop: start=0, step=1, limit=4
    $region2: #{basic_block_forward.5} parent=1 // loop_pre_header
      _
    $region3: #{basic_block_forward.5} parent=1 // loop_header
      %s13 = sphi 0, %s17
      %p14 = scmp.ge.s32.totalorder %s13, 4
      %s20 = sphi 0, %s32
      %s21 = sphi 0, %s28
      %s22 = sphi 0, %s20
      %s23 = sphi 0, %s21
      %s24 = sphi 0, %s22
      %s25 = sphi 0, %s23
      %s35 = sphi 0, %s37
      %s38 = sphi 0, %s35
      %s39 = sphi 0, %s38
      %s55 = sphi 0, %s39
      %s61 = sphi 0, %s63
      %s64 = sphi 0, %s61
      %s65 = sphi 0, %s64
      %s81 = sphi 0, %s65
      %s87 = sphi 0, %s89
      %s90 = sphi 0, %s87
      %s91 = sphi 0, %s90
      %s107 = sphi 0, %s91
      %s115 = sphi 0, %s117
      %s118 = sphi 0, %s115
      %s119 = sphi 0, %s118
      %s135 = sphi 0, %s119
      %s143 = sphi 0, %s145
      %s146 = sphi 0, %s143
      %s147 = sphi 0, %s146
      %s163 = sphi 0, %s147
    $region4: #{basic_block_forward.5} parent=1 // loop_header_branch
      %16 = sbr.rel (%p14) target = $region8
    $region5: #{basic_block_forward.5} parent=1 // loop_body
      %s18 = ssub.s32 %s13, 1
      %s19 = ssub.s32 %s13, 2
      %s26 = sadd.s32 1, %s21
      %p27 = scmp.ge.s32.totalorder %s26, 1
      %s28 = scalar_select %p27, 0, %s26
      %s29 = sadd.s32 1, %s20
      %s30 = scalar_select %p27, %s29, %s20
      %p31 = scmp.ge.s32.totalorder %s30, 2
      %s32 = scalar_select %p31, 0, %s30
      %s33 = ssub.s32 %s20, %s32
      %p34 = scmp.eq.s32.totalorder %s33, 0
      %s36 = sadd.s32 %s35, 1
      %s37 = scalar_select %p34, %s35, %s36
      %p40 = pneg %p34
      %p41 = scmp.eq.s32.totalorder %s13, 1
      %p42 = por %p40, %p41
      %p43 = scmp.ne.s32.totalorder %s35, %s38
      %p44 = scmp.eq.s32.totalorder %s13, 0
      %p45 = por %p43, %p44
      %p46 = scmp.ne.s32.totalorder %s35, %s38
      %p47 = scmp.eq.s32.totalorder %s18, 1
      %p48 = por %p46, %p47
      %p49 = scmp.ne.s32.totalorder %s38, %s39
      %p50 = scmp.eq.s32.totalorder %s18, 0
      %p51 = por %p49, %p50
      %p52 = scmp.ne.s32.totalorder %s38, %s39
      %p53 = scmp.eq.s32.totalorder %s19, 1
      %p54 = por %p52, %p53
      %p56 = scmp.ne.s32.totalorder %s39, %s55
      %p57 = scmp.eq.s32.totalorder %s19, 0
      %p58 = por %p56, %p57
      %s59 = ssub.s32 %s21, %s28
      %p60 = scmp.eq.s32.totalorder %s59, 0
      %s62 = sadd.s32 %s61, 1
      %s63 = scalar_select %p60, %s61, %s62
      %p66 = pneg %p60
      %p67 = scmp.eq.s32.totalorder %s13, 1
      %p68 = por %p66, %p67
      %p69 = scmp.ne.s32.totalorder %s61, %s64
      %p70 = scmp.eq.s32.totalorder %s13, 0
      %p71 = por %p69, %p70
      %p72 = scmp.ne.s32.totalorder %s61, %s64
      %p73 = scmp.eq.s32.totalorder %s18, 1
      %p74 = por %p72, %p73
      %p75 = scmp.ne.s32.totalorder %s64, %s65
      %p76 = scmp.eq.s32.totalorder %s18, 0
      %p77 = por %p75, %p76
      %p78 = scmp.ne.s32.totalorder %s64, %s65
      %p79 = scmp.eq.s32.totalorder %s19, 1
      %p80 = por %p78, %p79
      %p82 = scmp.ne.s32.totalorder %s65, %s81
      %p83 = scmp.eq.s32.totalorder %s19, 0
      %p84 = por %p82, %p83
      %s85 = ssub.s32 %s21, %s28
      %p86 = scmp.eq.s32.totalorder %s85, 0
      %s88 = sadd.s32 %s87, 1
      %s89 = scalar_select %p86, %s87, %s88
      %p92 = pneg %p86
      %p93 = scmp.eq.s32.totalorder %s13, 1
      %p94 = por %p92, %p93
      %p95 = scmp.ne.s32.totalorder %s87, %s90
      %p96 = scmp.eq.s32.totalorder %s13, 0
      %p97 = por %p95, %p96
      %p98 = scmp.ne.s32.totalorder %s87, %s90
      %p99 = scmp.eq.s32.totalorder %s18, 1
      %p100 = por %p98, %p99
      %p101 = scmp.ne.s32.totalorder %s90, %s91
      %p102 = scmp.eq.s32.totalorder %s18, 0
      %p103 = por %p101, %p102
      %p104 = scmp.ne.s32.totalorder %s90, %s91
      %p105 = scmp.eq.s32.totalorder %s19, 1
      %p106 = por %p104, %p105
      %p108 = scmp.ne.s32.totalorder %s91, %s107
      %p109 = scmp.eq.s32.totalorder %s19, 0
      %p110 = por %p108, %p109
      %s111 = ssub.s32 %s20, %s32
      %s112 = ssub.s32 %s21, %s28
      %s113 = sor.u32 %s111, %s112
      %p114 = scmp.eq.s32.totalorder %s113, 0
      %s116 = sadd.s32 %s115, 1
      %s117 = scalar_select %p114, %s115, %s116
      %p120 = pneg %p114
      %p121 = scmp.eq.s32.totalorder %s13, 1
      %p122 = por %p120, %p121
      %p123 = scmp.ne.s32.totalorder %s115, %s118
      %p124 = scmp.eq.s32.totalorder %s13, 0
      %p125 = por %p123, %p124
      %p126 = scmp.ne.s32.totalorder %s115, %s118
      %p127 = scmp.eq.s32.totalorder %s18, 1
      %p128 = por %p126, %p127
      %p129 = scmp.ne.s32.totalorder %s118, %s119
      %p130 = scmp.eq.s32.totalorder %s18, 0
      %p131 = por %p129, %p130
      %p132 = scmp.ne.s32.totalorder %s118, %s119
      %p133 = scmp.eq.s32.totalorder %s19, 1
      %p134 = por %p132, %p133
      %p136 = scmp.ne.s32.totalorder %s119, %s135
      %p137 = scmp.eq.s32.totalorder %s19, 0
      %p138 = por %p136, %p137
      %s139 = ssub.s32 %s20, %s32
      %s140 = ssub.s32 %s21, %s28
      %s141 = sor.u32 %s139, %s140
      %p142 = scmp.eq.s32.totalorder %s141, 0
      %s144 = sadd.s32 %s143, 1
      %s145 = scalar_select %p142, %s143, %s144
      %p148 = pneg %p142
      %p149 = scmp.eq.s32.totalorder %s13, 1
      %p150 = por %p148, %p149
      %p151 = scmp.ne.s32.totalorder %s143, %s146
      %p152 = scmp.eq.s32.totalorder %s13, 0
      %p153 = por %p151, %p152
      %p154 = scmp.ne.s32.totalorder %s143, %s146
      %p155 = scmp.eq.s32.totalorder %s18, 1
      %p156 = por %p154, %p155
      %p157 = scmp.ne.s32.totalorder %s146, %s147
      %p158 = scmp.eq.s32.totalorder %s18, 0
      %p159 = por %p157, %p158
      %p160 = scmp.ne.s32.totalorder %s146, %s147
      %p161 = scmp.eq.s32.totalorder %s19, 1
      %p162 = por %p160, %p161
      %p164 = scmp.ne.s32.totalorder %s147, %s163
      %p165 = scmp.eq.s32.totalorder %s19, 0
      %p166 = por %p164, %p165
      %p167 = scmp.le.s32.totalorder 1, %s13
      %p168 = scmp.lt.s32.totalorder %s13, 3
      %p169 = pnand %p167, %p168
      %p170 = pneg %p169
      // Predicated region
      $region9: #{basic_block_forward.5} parent=5 // pred_check
        _
      $region10: #{basic_block_forward.5} parent=5 // pred_check_branch
        %172 = sbr.rel (%p169) target = $region12
      $region11: #{basic_block_forward.5} parent=5 // pred_region
        %s173 = ssub.s32 %s13, 1
        // Predicated region
        $region13: #{basic_block_forward.5} parent=11 // pred_check
          %p174 = pneg %p77
        $region14: #{basic_block_forward.5} parent=11 // pred_check_branch
          %176 = sbr.rel (%p174) target = $region16
        $region15: #{basic_block_forward.5} parent=11 // pred_region
          %p177 = scmp.lt.s32.totalorder %s23, 0
          %s178 = scalar_select %p177, %s23, 0
          %s179 = smul.addr %s178, 4
          %s180 = scalar_lea.vmem %s1, %s179
        $region16: #{basic_block_forward.5} parent=11 // pred_fallthru
          _
        // Predicated region
        $region17: #{basic_block_forward.5} parent=11 // pred_check
          %p181 = pneg %p103
        $region18: #{basic_block_forward.5} parent=11 // pred_check_branch
          %183 = sbr.rel (%p181) target = $region20
        $region19: #{basic_block_forward.5} parent=11 // pred_region
          %p184 = scmp.lt.s32.totalorder %s23, 0
          %s185 = scalar_select %p184, %s23, 0
          %s186 = scalar_lea.vmem %s2, %s185
        $region20: #{basic_block_forward.5} parent=11 // pred_fallthru
          _
      $region12: #{basic_block_forward.5} parent=5 // pred_fallthru
        _
      %p187 = scmp.lt.s32.totalorder %s13, 2
      // Predicated region
      $region21: #{basic_block_forward.5} parent=5 // pred_check
        %p188 = pneg %p187
      $region22: #{basic_block_forward.5} parent=5 // pred_check_branch
        %190 = sbr.rel (%p188) target = $region24
      $region23: #{basic_block_forward.5} parent=5 // pred_region
        // Predicated region
        $region25: #{basic_block_forward.5} parent=23 // pred_check
          %p191 = pneg %p45
        $region26: #{basic_block_forward.5} parent=23 // pred_check_branch
          %193 = sbr.rel (%p191) target = $region28
        $region27: #{basic_block_forward.5} parent=23 // pred_region
          %s194 = smul.u32 8, %s20
          %p195 = scmp.lt.s32.totalorder %s194, 15
          %s196 = scalar_select %p195, %s194, 15
          %s197 = smul.addr %s196, 3
          %s198 = smul.addr %s197, 4
          %s199 = scalar_lea.vmem %s0, %s198
          %s200 = smul.u32 8, %s20
        $region28: #{basic_block_forward.5} parent=23 // pred_fallthru
          _
        // Predicated region
        $region29: #{basic_block_forward.5} parent=23 // pred_check
          %p201 = pneg %p125
        $region30: #{basic_block_forward.5} parent=23 // pred_check_branch
          %203 = sbr.rel (%p201) target = $region32
        $region31: #{basic_block_forward.5} parent=23 // pred_region
          %s204 = smul.u32 8, %s20
          %p205 = scmp.lt.s32.totalorder %s204, 15
          %s206 = scalar_select %p205, %s204, 15
          %p207 = scmp.lt.s32.totalorder %s21, 0
          %s208 = scalar_select %p207, %s21, 0
          %s209 = sadd.s32 %s208, %s206
          %s210 = smul.addr %s209, 4
          %s211 = scalar_lea.vmem %s3, %s210
          %s212 = smul.u32 8, %s20
        $region32: #{basic_block_forward.5} parent=23 // pred_fallthru
          _
      $region24: #{basic_block_forward.5} parent=5 // pred_fallthru
        _
      %p213 = scmp.le.s32.totalorder 1, %s13
      %p214 = scmp.lt.s32.totalorder %s13, 3
      %p215 = pnand %p213, %p214
      %p216 = pneg %p215
      // Predicated region
      $region33: #{basic_block_forward.5} parent=5 // pred_check
        _
      $region34: #{basic_block_forward.5} parent=5 // pred_check_branch
        %218 = sbr.rel (%p215) target = $region36
      $region35: #{basic_block_forward.5} parent=5 // pred_region
        %s219 = ssub.s32 %s13, 1
        %s220 = smul.u32 8, %s22
        %p221 = scmp.lt.s32.totalorder %s220, 15
        %s222 = scalar_select %p221, %s220, 15
        %s223 = smul.addr %s222, 3
        %s224 = smul.addr %s223, 4
        %s225 = scalar_lea.vmem %s0, %s224
        %p226 = pneg %p51
        %p227 = pneg %p48
        %p228 = scmp.lt.s32.totalorder %s23, 0
        %s229 = scalar_select %p228, %s23, 0
        %s230 = smul.addr %s229, 4
        %s231 = scalar_lea.vmem %s1, %s230
        %p232 = pneg %p77
        %p233 = pneg %p74
        %p234 = scmp.lt.s32.totalorder %s23, 0
        %s235 = scalar_select %p234, %s23, 0
        %s236 = scalar_lea.vmem %s2, %s235
        %p237 = pneg %p103
        %p238 = pneg %p100
        %s239 = smul.u32 8, %s22
        %p240 = scmp.lt.s32.totalorder %s239, 15
        %s241 = scalar_select %p240, %s239, 15
        %p242 = scmp.lt.s32.totalorder %s23, 0
        %s243 = scalar_select %p242, %s23, 0
        %s244 = sadd.s32 %s243, %s241
        %s245 = smul.addr %s244, 4
        %s246 = scalar_lea.vmem %s3, %s245
        %p247 = pneg %p131
        %p248 = pneg %p128
        %p249 = pneg %p159
        %p250 = pneg %p156
        %s251 = sand.u32 %s146, 1
        %s252 = scalar_lea.sflag [#allocation3], %s251
        %s253 = sand.u32 %s146, 1
        %s254 = smul.addr %s253, 64
        %s255 = scalar_lea.vmem [#allocation2], %s254
        %s256 = smul.u32 8, %s22
        %p257 = scmp.lt.s32.totalorder %s256, 15
        %s258 = scalar_select %p257, %s256, 15
        %s259 = smul.addr %s258, 3
        %s260 = smul.addr %s259, 4
        %s261 = scalar_lea.vmem %s0, %s260
        %s262 = smul.u32 8, %s22
        %p263 = scmp.lt.s32.totalorder %s23, 0
        %s264 = scalar_select %p263, %s23, 0
        %s265 = smul.addr %s264, 4
        %s266 = scalar_lea.vmem %s1, %s265
        %p267 = scmp.lt.s32.totalorder %s23, 0
        %s268 = scalar_select %p267, %s23, 0
        %s269 = scalar_lea.vmem %s2, %s268
        %s270 = smul.u32 8, %s22
        %p271 = scmp.lt.s32.totalorder %s270, 15
        %s272 = scalar_select %p271, %s270, 15
        %p273 = scmp.lt.s32.totalorder %s23, 0
        %s274 = scalar_select %p273, %s23, 0
        %s275 = sadd.s32 %s274, %s272
        %s276 = smul.addr %s275, 4
        %s277 = scalar_lea.vmem %s3, %s276
        %s278 = smul.u32 8, %s22
        %s279 = smul.u32 8, %s22
        %v281 = vld [vmem:[%s261] sm:$0xff]
        %v282 = vld [vmem:[%s261 + $0x8] sm:$0xf]
        %v283 = vld [vmem:[%s261 + $0xc] sm:$0xff]
        %v284 = vld [vmem:[%s261 + $0x14] sm:$0xf]
        %v285 = vld [vmem:[%s261 + $0x18] sm:$0xff]
        %v286 = vld [vmem:[%s261 + $0x20] sm:$0xf]
        %v287 = vld [vmem:[%s261 + $0x24] sm:$0xff]
        %v288 = vld [vmem:[%s261 + $0x2c] sm:$0xf]
        %v289 = vld [vmem:[%s261 + $0x30] sm:$0xff]
        %v290 = vld [vmem:[%s261 + $0x38] sm:$0xf]
        %v291 = vld [vmem:[%s261 + $0x3c] sm:$0xff]
        %v292 = vld [vmem:[%s261 + $0x44] sm:$0xf]
        %v293 = vld [vmem:[%s261 + $0x48] sm:$0xff]
        %v294 = vld [vmem:[%s261 + $0x50] sm:$0xf]
        %v295 = vld [vmem:[%s261 + $0x54] sm:$0xff]
        %v296 = vld [vmem:[%s261 + $0x5c] sm:$0xf]
        %v297 = vld [vmem:[%s266] sm:$0xf]
        %v298 = vld [vmem:[%s266 + $0x4] sm:$0xf]
        %v299 = vld [vmem:[%s266 + $0x8] sm:$0xf]
        %v300 = vld [vmem:[%s266 + $0xc] sm:$0xf]
        %v301 = vld [vmem:[%s266 + $0x10] sm:$0xf]
        %v302 = vld [vmem:[%s266 + $0x14] sm:$0xf]
        %v303 = vld [vmem:[%s266 + $0x18] sm:$0xf]
        %v304 = vld [vmem:[%s266 + $0x1c] sm:$0xf]
        %v305 = vld [vmem:[%s266 + $0x20] sm:$0xf]
        %v306 = vld [vmem:[%s266 + $0x24] sm:$0xf]
        %v307 = vld [vmem:[%s266 + $0x28] sm:$0xf]
        %v308 = vld [vmem:[%s266 + $0x2c] sm:$0xf]
        %v309 = vld [vmem:[%s266 + $0x30] sm:$0xf]
        %v310 = vld [vmem:[%s266 + $0x34] sm:$0xf]
        %v311 = vld [vmem:[%s266 + $0x38] sm:$0xf]
        %v312 = vld [vmem:[%s266 + $0x3c] sm:$0xf]
        %v313 = vld [vmem:[%s266 + $0x40] sm:$0xf]
        %v314 = vld [vmem:[%s266 + $0x44] sm:$0xf]
        %v315 = vld [vmem:[%s266 + $0x48] sm:$0xf]
        %v316 = vld [vmem:[%s266 + $0x4c] sm:$0xf]
        %v317 = vld [vmem:[%s266 + $0x50] sm:$0xf]
        %v318 = vld [vmem:[%s266 + $0x54] sm:$0xf]
        %v319 = vld [vmem:[%s266 + $0x58] sm:$0xf]
        %v320 = vld [vmem:[%s266 + $0x5c] sm:$0xf]
        %v321 = vld [vmem:[%s266 + $0x60] sm:$0xf]
        %v322 = vld [vmem:[%s266 + $0x64] sm:$0xf]
        %v323 = vld [vmem:[%s266 + $0x68] sm:$0xf]
        %v324 = vld [vmem:[%s266 + $0x6c] sm:$0xf]
        %v325 = vld [vmem:[%s266 + $0x70] sm:$0xf]
        %v326 = vld [vmem:[%s266 + $0x74] sm:$0xf]
        %v327 = vld [vmem:[%s266 + $0x78] sm:$0xf]
        %v328 = vld [vmem:[%s266 + $0x7c] sm:$0xf]
        %v329 = vld [vmem:[%s266 + $0x80] sm:$0xf]
        %v330 = vld [vmem:[%s266 + $0x84] sm:$0xf]
        %v331 = vld [vmem:[%s266 + $0x88] sm:$0xf]
        %v332 = vld [vmem:[%s266 + $0x8c] sm:$0xf]
        %v333 = vld [vmem:[%s269] sm:$0x1]
        %v335 = vlaneseq
        %v336 = vshrl.u32 %v335, 7
        %v337 = vsub.s32 0, %v336
        %v338 = vrot.slane %v333, %v337
        %v356 = vunpack.c.l.b16 %v281
        %v357 = vunpack.c.h.b16 %v281
        %v358 = vunpack.c.l.b16 %v282
        %v359 = vunpack.c.l.b16 %v283
        %v360 = vunpack.c.h.b16 %v283
        %v361 = vunpack.c.l.b16 %v284
        %v362 = vunpack.c.l.b16 %v285
        %v363 = vunpack.c.h.b16 %v285
        %v364 = vunpack.c.l.b16 %v286
        %v365 = vunpack.c.l.b16 %v287
        %v366 = vunpack.c.h.b16 %v287
        %v367 = vunpack.c.l.b16 %v288
        %v368 = vunpack.c.l.b16 %v289
        %v369 = vunpack.c.h.b16 %v289
        %v370 = vunpack.c.l.b16 %v290
        %v371 = vunpack.c.l.b16 %v291
        %v372 = vunpack.c.h.b16 %v291
        %v373 = vunpack.c.l.b16 %v292
        %v374 = vunpack.c.l.b16 %v293
        %v375 = vunpack.c.h.b16 %v293
        %v376 = vunpack.c.l.b16 %v294
        %v377 = vunpack.c.l.b16 %v295
        %v378 = vunpack.c.h.b16 %v295
        %v379 = vunpack.c.l.b16 %v296
        %v380 = vpack.c.b16 %v359, %v356
        %v381 = vpack.c.b16 %v360, %v357
        %v382 = vpack.c.b16 %v361, %v358
        %v383 = vpack.c.b16 %v365, %v362
        %v384 = vpack.c.b16 %v366, %v363
        %v385 = vpack.c.b16 %v367, %v364
        %v386 = vpack.c.b16 %v371, %v368
        %v387 = vpack.c.b16 %v372, %v369
        %v388 = vpack.c.b16 %v373, %v370
        %v389 = vpack.c.b16 %v377, %v374
        %v390 = vpack.c.b16 %v378, %v375
        %v391 = vpack.c.b16 %v379, %v376
        %v436 = vunpack.c.l.b16 %v297
        %v437 = vunpack.c.l.b16 %v298
        %v438 = vunpack.c.l.b16 %v299
        %v439 = vunpack.c.l.b16 %v300
        %v440 = vunpack.c.l.b16 %v301
        %v441 = vunpack.c.l.b16 %v302
        %v442 = vunpack.c.l.b16 %v303
        %v443 = vunpack.c.l.b16 %v304
        %v444 = vunpack.c.l.b16 %v305
        %v445 = vunpack.c.l.b16 %v306
        %v446 = vunpack.c.l.b16 %v307
        %v447 = vunpack.c.l.b16 %v308
        %v448 = vunpack.c.l.b16 %v309
        %v449 = vunpack.c.l.b16 %v310
        %v450 = vunpack.c.l.b16 %v311
        %v451 = vunpack.c.l.b16 %v312
        %v452 = vunpack.c.l.b16 %v313
        %v453 = vunpack.c.l.b16 %v314
        %v454 = vunpack.c.l.b16 %v315
        %v455 = vunpack.c.l.b16 %v316
        %v456 = vunpack.c.l.b16 %v317
        %v457 = vunpack.c.l.b16 %v318
        %v458 = vunpack.c.l.b16 %v319
        %v459 = vunpack.c.l.b16 %v320
        %v460 = vunpack.c.l.b16 %v321
        %v461 = vunpack.c.l.b16 %v322
        %v462 = vunpack.c.l.b16 %v323
        %v463 = vunpack.c.l.b16 %v324
        %v464 = vunpack.c.l.b16 %v325
        %v465 = vunpack.c.l.b16 %v326
        %v466 = vunpack.c.l.b16 %v327
        %v467 = vunpack.c.l.b16 %v328
        %v468 = vunpack.c.l.b16 %v329
        %v469 = vunpack.c.l.b16 %v330
        %v470 = vunpack.c.l.b16 %v331
        %v471 = vunpack.c.l.b16 %v332
        %v472 = vpack.c.b16 %v437, %v436
        %v473 = vpack.c.b16 %v439, %v438
        %v474 = vpack.c.b16 %v441, %v440
        %v475 = vpack.c.b16 %v443, %v442
        %v476 = vpack.c.b16 %v445, %v444
        %v477 = vpack.c.b16 %v447, %v446
        %v478 = vpack.c.b16 %v449, %v448
        %v479 = vpack.c.b16 %v451, %v450
        %v480 = vpack.c.b16 %v453, %v452
        %v481 = vpack.c.b16 %v455, %v454
        %v482 = vpack.c.b16 %v457, %v456
        %v483 = vpack.c.b16 %v459, %v458
        %v484 = vpack.c.b16 %v461, %v460
        %v485 = vpack.c.b16 %v463, %v462
        %v486 = vpack.c.b16 %v465, %v464
        %v487 = vpack.c.b16 %v467, %v466
        %v488 = vpack.c.b16 %v469, %v468
        %v489 = vpack.c.b16 %v471, %v470
        %vm508 = vcmask 261120
        %v510 = vsel %vm508, %v382, 0
        %v513 = vsel %vm508, %v385, 0
        %v516 = vsel %vm508, %v388, 0
        %v519 = vsel %vm508, %v391, 0
        %521 = vmatprep.subr.bf16.mxu0 0
        %522 = vmatpush1.bf16.msra.mxu0 %v479
        %523 = vmatprep.subr.bf16.mxu0 0
        %524 = vmatpush1.bf16.msra.mxu0 %v478
        %525 = vmatprep.subr.bf16.mxu0 0
        %526 = vmatpush1.bf16.msra.mxu0 %v477
        %527 = vmatprep.subr.bf16.mxu0 0
        %528 = vmatpush1.bf16.msra.mxu0 %v476
        %529 = vmatprep.subr.bf16.mxu0 0
        %530 = vmatpush1.bf16.msra.mxu0 %v475
        %531 = vmatprep.subr.bf16.mxu0 0
        %532 = vmatpush1.bf16.msra.mxu0 %v474
        %533 = vmatprep.subr.bf16.mxu0 0
        %534 = vmatpush1.bf16.msra.mxu0 %v473
        %535 = vmatprep.subr.bf16.mxu0 0
        %536 = vmatpush1.bf16.msra.mxu0 %v472
        %537 = vmatprep.subr.bf16.mxu0 0
        %538 = vmatpush2.bf16.msra.mxu0 %v487
        %539 = vmatprep.subr.bf16.mxu0 0
        %540 = vmatpush2.bf16.msra.mxu0 %v486
        %541 = vmatprep.subr.bf16.mxu0 0
        %542 = vmatpush2.bf16.msra.mxu0 %v485
        %543 = vmatprep.subr.bf16.mxu0 0
        %544 = vmatpush2.bf16.msra.mxu0 %v484
        %545 = vmatprep.subr.bf16.mxu0 0
        %546 = vmatpush2.bf16.msra.mxu0 %v483
        %547 = vmatprep.subr.bf16.mxu0 0
        %548 = vmatpush2.bf16.msra.mxu0 %v482
        %549 = vmatprep.subr.bf16.mxu0 0
        %550 = vmatpush2.bf16.msra.mxu0 %v481
        %551 = vmatprep.subr.bf16.mxu0 0
        %552 = vmatpush2.bf16.msra.mxu0 %v480
        %553 = vmatprep.mubr.bf16.mxu0 %v381
        %554 = vmatmul.mubr.bf16.gmra.mxu0 %v380
        %v555 = vpop.f32.mrf.mxu0
        %v556 = vadd.f32 %v338, %v555
        %v557 = vpop.f32.mrf.mxu0
        %v558 = vpop.f32.mrf.mxu0
        %v559 = vadd.f32 %v338, %v558
        %v560 = vpop.f32.mrf.mxu0
        %561 = vmatprep.mubr.bf16.mxu0 %v384
        %562 = vmatmul.mubr.bf16.gmra.mxu0 %v383
        %v563 = vpop.f32.mrf.mxu0
        %v564 = vadd.f32 %v338, %v563
        %v565 = vpop.f32.mrf.mxu0
        %v566 = vpop.f32.mrf.mxu0
        %v567 = vadd.f32 %v338, %v566
        %v568 = vpop.f32.mrf.mxu0
        %569 = vmatprep.mubr.bf16.mxu0 %v387
        %570 = vmatmul.mubr.bf16.gmra.mxu0 %v386
        %v571 = vpop.f32.mrf.mxu0
        %v572 = vadd.f32 %v338, %v571
        %v573 = vpop.f32.mrf.mxu0
        %v574 = vpop.f32.mrf.mxu0
        %v575 = vadd.f32 %v338, %v574
        %v576 = vpop.f32.mrf.mxu0
        %577 = vmatprep.mubr.bf16.mxu0 %v390
        %578 = vmatmul.mubr.bf16.gmra.mxu0 %v389
        %v579 = vpop.f32.mrf.mxu0
        %v580 = vadd.f32 %v338, %v579
        %v581 = vpop.f32.mrf.mxu0
        %v582 = vpop.f32.mrf.mxu0
        %v583 = vadd.f32 %v338, %v582
        %v584 = vpop.f32.mrf.mxu0
        %585 = vdwg.mxu0
        %586 = vmatprep.subr.bf16.mxu0 0
        %587 = vmatpush1.bf16.msra.mxu0 0
        %588 = vmatprep.subr.bf16.mxu0 0
        %589 = vmatpush1.bf16.msra.mxu0 0
        %590 = vmatprep.subr.bf16.mxu0 0
        %591 = vmatpush1.bf16.msra.mxu0 0
        %592 = vmatprep.subr.bf16.mxu0 0
        %593 = vmatpush1.bf16.msra.mxu0 0
        %594 = vmatprep.subr.bf16.mxu0 0
        %595 = vmatpush1.bf16.msra.mxu0 0
        %596 = vmatprep.subr.bf16.mxu0 0
        %597 = vmatpush1.bf16.msra.mxu0 0
        %598 = vmatprep.subr.bf16.mxu0 0
        %599 = vmatpush1.bf16.msra.mxu0 %v489
        %600 = vmatprep.subr.bf16.mxu0 0
        %601 = vmatpush1.bf16.msra.mxu0 %v488
        %602 = vmatprep.subr.bf16.mxu0 0
        %603 = vmatpush2.bf16.msra.mxu0 0
        %604 = vmatprep.subr.bf16.mxu0 0
        %605 = vmatpush2.bf16.msra.mxu0 0
        %606 = vmatprep.subr.bf16.mxu0 0
        %607 = vmatpush2.bf16.msra.mxu0 0
        %608 = vmatprep.subr.bf16.mxu0 0
        %609 = vmatpush2.bf16.msra.mxu0 0
        %610 = vmatprep.subr.bf16.mxu0 0
        %611 = vmatpush2.bf16.msra.mxu0 0
        %612 = vmatprep.subr.bf16.mxu0 0
        %613 = vmatpush2.bf16.msra.mxu0 0
        %614 = vmatprep.subr.bf16.mxu0 0
        %615 = vmatpush2.bf16.msra.mxu0 0
        %616 = vmatprep.subr.bf16.mxu0 0
        %617 = vmatpush2.bf16.msra.mxu0 0
        %618 = vmatprep.mubr.bf16.mxu0 0
        %619 = vmatmul.mubr.bf16.gmra.mxu0 %v510
        %v620 = vpop.f32.mrf.mxu0
        %v621 = vadd.f32 %v556, %v620
        %v622 = vpop.f32.mrf.mxu0
        %v623 = vpop.f32.mrf.mxu0
        %v624 = vadd.f32 %v559, %v623
        %v625 = vpop.f32.mrf.mxu0
        %626 = vmatprep.mubr.bf16.mxu0 0
        %627 = vmatmul.mubr.bf16.gmra.mxu0 %v513
        %v628 = vpop.f32.mrf.mxu0
        %v629 = vadd.f32 %v564, %v628
        %v630 = vpop.f32.mrf.mxu0
        %v631 = vpop.f32.mrf.mxu0
        %v632 = vadd.f32 %v567, %v631
        %v633 = vpop.f32.mrf.mxu0
        %634 = vmatprep.mubr.bf16.mxu0 0
        %635 = vmatmul.mubr.bf16.gmra.mxu0 %v516
        %v636 = vpop.f32.mrf.mxu0
        %v637 = vadd.f32 %v572, %v636
        %v638 = vpop.f32.mrf.mxu0
        %v639 = vpop.f32.mrf.mxu0
        %v640 = vadd.f32 %v575, %v639
        %v641 = vpop.f32.mrf.mxu0
        %642 = vmatprep.mubr.bf16.mxu0 0
        %643 = vmatmul.mubr.bf16.gmra.mxu0 %v519
        %v644 = vpop.f32.mrf.mxu0
        %v645 = vadd.f32 %v580, %v644
        %v646 = vpop.f32.mrf.mxu0
        %v647 = vpop.f32.mrf.mxu0
        %v648 = vadd.f32 %v583, %v647
        %v649 = vpop.f32.mrf.mxu0
        %650 = vdwg.mxu0
        %v651 = vld [vmem:[%s277] sm:$0xf]
        %v652 = vld [vmem:[%s277 + $0x4] sm:$0xf]
        %v653 = vld [vmem:[%s277 + $0x8] sm:$0xf]
        %v654 = vld [vmem:[%s277 + $0xc] sm:$0xf]
        %v655 = vld [vmem:[%s277 + $0x10] sm:$0xf]
        %v656 = vld [vmem:[%s277 + $0x14] sm:$0xf]
        %v657 = vld [vmem:[%s277 + $0x18] sm:$0xf]
        %v658 = vld [vmem:[%s277 + $0x1c] sm:$0xf]
        %v659 = vunpack.c.l.bf16 %v651
        %v660 = vunpack.c.l.bf16 %v652
        %v661 = vunpack.c.l.bf16 %v653
        %v662 = vunpack.c.l.bf16 %v654
        %v663 = vunpack.c.l.bf16 %v655
        %v664 = vunpack.c.l.bf16 %v656
        %v665 = vunpack.c.l.bf16 %v657
        %v666 = vunpack.c.l.bf16 %v658
        %v667 = vadd.f32 %v621, %v659
        %v668 = vadd.f32 %v624, %v660
        %v669 = vadd.f32 %v629, %v661
        %v670 = vadd.f32 %v632, %v662
        %v671 = vadd.f32 %v637, %v663
        %v672 = vadd.f32 %v640, %v664
        %v673 = vadd.f32 %v645, %v665
        %v674 = vadd.f32 %v648, %v666
        %v675 = vmax.f32 %v667, 0.0
        %v676 = vmax.f32 %v668, 0.0
        %v677 = vmax.f32 %v669, 0.0
        %v678 = vmax.f32 %v670, 0.0
        %v679 = vmax.f32 %v671, 0.0
        %v680 = vmax.f32 %v672, 0.0
        %v681 = vmax.f32 %v673, 0.0
        %v682 = vmax.f32 %v674, 0.0
        %683 = vst [vmem:[%s255] sm:$0xff] %v675
        %684 = vst [vmem:[%s255 + $0x8] sm:$0xff] %v676
        %685 = vst [vmem:[%s255 + $0x10] sm:$0xff] %v677
        %686 = vst [vmem:[%s255 + $0x18] sm:$0xff] %v678
        %687 = vst [vmem:[%s255 + $0x20] sm:$0xff] %v679
        %688 = vst [vmem:[%s255 + $0x28] sm:$0xff] %v680
        %689 = vst [vmem:[%s255 + $0x30] sm:$0xff] %v681
        %690 = vst [vmem:[%s255 + $0x38] sm:$0xff] %v682
        %s691 = sand.u32 %s146, 1
        %s692 = scalar_lea.sflag [#allocation3], %s691
        %s693 = sand.u32 %s146, 1
        %s694 = smul.addr %s693, 64
        %s695 = scalar_lea.vmem [#allocation2], %s694
        // Predicated region
        $region37: #{basic_block_forward.5} parent=35 // pred_check
          %p696 = pneg %p156
        $region38: #{basic_block_forward.5} parent=35 // pred_check_branch
          %698 = sbr.rel (%p696) target = $region40
        $region39: #{basic_block_forward.5} parent=35 // pred_region
          %s699 = smul.u32 8, %s22
          %s701 = ssub.s32 1024, 1024
          %702 = vsyncadd %s692, %s701
          %s703 = sadd.s32 %s23, %s699
          %s704 = smul.addr %s703, 128
          %s705 = scalar_lea.hbm %s4, %s704
          %s706 = sshll.u32 %s695, 4
          %s707 = int_to_ptr.vmem [resolvable:$true] %s706
          %712 = dma.vmem_to_hbm [thread:$0]  %s707, 1024, %s705, %s692, 128, 128, 8
        $region40: #{basic_block_forward.5} parent=35 // pred_fallthru
          _
      $region36: #{basic_block_forward.5} parent=5 // pred_fallthru
        _
      %p713 = scmp.le.s32.totalorder 2, %s13
      // Predicated region
      $region41: #{basic_block_forward.5} parent=5 // pred_check
        %p714 = pneg %p713
      $region42: #{basic_block_forward.5} parent=5 // pred_check_branch
        %716 = sbr.rel (%p714) target = $region44
      $region43: #{basic_block_forward.5} parent=5 // pred_region
        %s717 = ssub.s32 %s13, 2
        // Predicated region
        $region45: #{basic_block_forward.5} parent=43 // pred_check
          %p718 = pneg %p162
        $region46: #{basic_block_forward.5} parent=43 // pred_check_branch
          %720 = sbr.rel (%p718) target = $region48
        $region47: #{basic_block_forward.5} parent=43 // pred_region
          %s721 = sand.u32 %s147, 1
          %s722 = scalar_lea.sflag [#allocation3], %s721
          %s723 = sand.u32 %s147, 1
          %s724 = smul.addr %s723, 64
          %s725 = scalar_lea.vmem [#allocation2], %s724
          %726 = dma.done %s722, 1024
        $region48: #{basic_block_forward.5} parent=43 // pred_fallthru
          _
      $region44: #{basic_block_forward.5} parent=5 // pred_fallthru
        _
    $region6: #{basic_block_forward.5} parent=1 // loop_footer
      %s17 = sadd.s32 1, %s13
    $region7: #{basic_block_forward.5} parent=1 // loop_footer_branch
      %12 = sbr.rel target = $region3
    $region8: #{basic_block_forward.5} parent=1 // loop_exit
      _
    %727 = vsyncpa [#allocation3], 1
    %s728 = scalar_lea.sflag [#allocation3], 1
    %729 = vsyncpa %s728, 1

</llo_original>
